<compile_context>
chip_gen: v6e
topology: v6e:2x2x1
jax: 0.10.0
libtpu: 0.0.40
codegen_flags: <defaults>
</compile_context>

<pallas_src>
import jax
import jax.numpy as jnp
from jax.experimental import pallas as pl
from jax.experimental.pallas import tpu as pltpu


def _round_up(x, m):
    return ((x + m - 1) // m) * m


def _cdiv(a, b):
    return -(-a // b)


# ----------------------------------------------------------------------------
# Main kernel: attention + fusion + FFN + LayerNorm, gridded over proposals N.
# ----------------------------------------------------------------------------
def _spa_main_kernel(
    visual_ref,                 # (TN, D)   f32  (pipelined proposal rows)
    kT_ref,                     # (D, KPAD) bf16 keys incl. dummy, pre-transposed
    v_ref,                      # (KPAD, D) bf16 values; dummy / pad rows are zero
    mask_ref,                   # (1, KPAD) f32  additive key mask (0 / -1e30)
    wq_ref,                     # (D, D)    bf16 (1/sqrt(D) temperature folded in)
    w12_ref, b12_ref,           # (2D, D)   bf16 block-diag [w1 0; 0 w2], (1, D) f32
    w3_ref, b3_ref,             # (2D, D)   bf16 [w3a; w3b; w3c], (1, D) f32
    wf1_ref, bf1_ref,           # (D, F)    bf16, (1, F) f32
    wf2_ref, bf2_ref,           # (F, D)    bf16, (1, D) f32
    lng_ref, lnb_ref,           # (1, D)    f32 LayerNorm gamma / beta
    out_ref,                    # (TN, D)   f32 sim2stext rows
    attn_ref,                   # (TN, KPAD) bf16 attention weights
):
    f32, bf16 = jnp.float32, jnp.bfloat16

    visual = visual_ref[...]
    vis_bf = visual.astype(bf16)

    # ---- scaled dot-product attention over text keys + learned dummy key ----
    q = jnp.dot(vis_bf, wq_ref[...], preferred_element_type=f32)           # (TN, D)
    s = jnp.dot(q.astype(bf16), kT_ref[...], preferred_element_type=f32)   # (TN, KPAD)
    s = s + mask_ref[...]                       # padded key columns -> -1e30

    m = jnp.max(s, axis=-1, keepdims=True)
    e = jnp.exp(s - m)                          # padded columns underflow to 0
    attn = e * pl.reciprocal(jnp.sum(e, axis=-1, keepdims=True), approx=True)
    attn_ref[...] = attn.astype(attn_ref.dtype)

    # dummy / padded value rows are zero -> contribute nothing
    out = jnp.dot(attn.astype(bf16), v_ref[...], preferred_element_type=f32)

    # ---- fused linear1 / linear2 (block-diagonal weight, 256-deep, lane-dense)
    x12 = jnp.concatenate([(out * visual).astype(bf16),
                           (visual - out).astype(bf16)], axis=-1)          # (TN, 2D)
    o12 = jnp.maximum(
        jnp.dot(x12, w12_ref[...], preferred_element_type=f32) + b12_ref[...],
        0.0)                                                               # (TN, D) = [o1|o2]

    # ---- fused linear3 over concat([o1, o2, residual]) -----------------------
    x3 = jnp.concatenate([o12.astype(bf16), vis_bf], axis=-1)              # (TN, 2D)
    out3 = jnp.dot(x3, w3_ref[...], preferred_element_type=f32) + b3_ref[...]

    # ---- FFN (D -> d_ffn -> D) + residual + LayerNorm (two-pass statistics) --
    h = jnp.maximum(
        jnp.dot(out3.astype(bf16), wf1_ref[...], preferred_element_type=f32)
        + bf1_ref[...], 0.0)
    t = out3 + jnp.dot(h.astype(bf16), wf2_ref[...],
                       preferred_element_type=f32) + bf2_ref[...]

    inv_d = 1.0 / t.shape[-1]
    mu = jnp.sum(t, axis=-1, keepdims=True) * inv_d
    d = t - mu
    var = jnp.sum(d * d, axis=-1, keepdims=True) * inv_d
    tn = d * jax.lax.rsqrt(var + 1e-5) * lng_ref[...] + lnb_ref[...]

    out_ref[...] = jnp.maximum(tn, 0.0)         # final ReLU on sim2stext


# ----------------------------------------------------------------------------
# Tiling policy: adaptive tile, >= 2 grid steps when N allows (v7x megacore).
# ----------------------------------------------------------------------------
def _pick_tile_n(n):
    if n < 32:
        return _round_up(max(n, 8), 8)            # single full-extent tile
    n_tiles = max(2, _cdiv(n, 256))               # >= 2 steps; ~256-row tiles for big N
    return _round_up(_cdiv(n, n_tiles), 16)       # 16-row multiple (bf16 sublane pack)


# ----------------------------------------------------------------------------
# Wrapper
# ----------------------------------------------------------------------------
@jax.jit
def sematic_proposal_attention(visual_feat, text_feat_full, params):
    """visual_feat: (N, D) f32; text_feat_full: (K, S) f32 (class embeds + bg)."""
    f32, bf16 = jnp.float32, jnp.bfloat16
    N, D = visual_feat.shape
    K = text_feat_full.shape[0]
    n_keys = K + 1                                # real keys + learned dummy key
    KPAD = _round_up(n_keys, 128)                 # lane-dense key / attn axis
    Dh = D // 2
    d_ffn = params["wf1"].shape[1]

    # ---- text-side projections: K ~ 16 rows, plain XLA, fused with padding ---
    kfeat = jax.nn.relu(text_feat_full @ params["wkp"] + params["bkp"])
    vfeat = jax.nn.relu(text_feat_full @ params["wvp"] + params["bvp"])
    k_txt = kfeat @ params["wk"]
    v_txt = vfeat @ params["wv"]

    pad = KPAD - n_keys
    k_full = jnp.concatenate([k_txt, params["dummy"], jnp.zeros((pad, D), f32)], 0)
    kT = k_full.T.astype(bf16)                    # (D, KPAD) stationary score operand
    v_full = jnp.concatenate([v_txt, jnp.zeros((pad + 1, D), f32)], 0).astype(bf16)

    key_mask = jnp.where(jnp.arange(KPAD) < n_keys, 0.0, -1e30
                         ).astype(f32)[None, :]   # (1, KPAD) additive pad mask

    inv_temp = 1.0 / jnp.sqrt(jnp.asarray(D, f32))
    wq_s = (params["wq"] * inv_temp).astype(bf16)  # fold softmax temperature

    # fused block-diagonal linear1/linear2 and fused linear3 weights
    zero = jnp.zeros((D, Dh), f32)
    w12 = jnp.concatenate(
        [jnp.concatenate([params["w1"], zero], axis=1),
         jnp.concatenate([zero, params["w2"]], axis=1)], axis=0).astype(bf16)  # (2D, D)
    b12 = jnp.concatenate([params["b1"], params["b2"]], axis=1)                # (1, D)
    w3 = jnp.concatenate([params["w3a"], params["w3b"], params["w3c"]],
                         axis=0).astype(bf16)                                  # (2D, D)
    wf1 = params["wf1"].astype(bf16)
    wf2 = params["wf2"].astype(bf16)

    # ---- adaptive grid over the proposal dimension ---------------------------
    TILE_N = _pick_tile_n(N)
    N_pad = _round_up(max(N, TILE_N), TILE_N)
    grid = (N_pad // TILE_N,)
    visual_p = jnp.pad(visual_feat, ((0, N_pad - N), (0, 0)))

    def row_spec(last):
        return pl.BlockSpec((TILE_N, last), lambda i: (i, 0))

    def const(shape):
        # Constant index_map: resident in VMEM for the whole call, single-buffered.
        return pl.BlockSpec(shape, lambda i: (0, 0), pipeline_mode=pl.Buffered(1))

    in_specs = [
        row_spec(D),                              # visual rows (pipelined)
        const((D, KPAD)), const((KPAD, D)),       # kT, v_full
        const((1, KPAD)),                         # additive key mask
        const((D, D)),                            # wq (temperature folded)
        const((2 * D, D)), const((1, D)),         # w12 block-diag, b12
        const((2 * D, D)), const((1, D)),         # w3 fused, b3
        const((D, d_ffn)), const((1, d_ffn)),     # wf1, bf1
        const((d_ffn, D)), const((1, D)),         # wf2, bf2
        const((1, D)), const((1, D)),             # ln gamma, beta
    ]

    # ---- tight VMEM bound: resident weights + buffered tiles + slack ---------
    weight_bytes = 2 * (2 * D * KPAD + 5 * D * D + 2 * D * d_ffn)      # bf16 weights
    weight_bytes += 4 * (KPAD + 5 * D + d_ffn)                         # f32 bias rows
    tile_bytes = 2 * (TILE_N * D * 4 + TILE_N * D * 4 + TILE_N * KPAD * 2)
    act_bytes = TILE_N * (d_ffn + 8 * D + 2 * KPAD) * 4                # live activations
    vmem_limit = min(max(weight_bytes + tile_bytes + act_bytes + (8 << 20),
                         16 << 20), 32 << 20)

    flops = 2 * N_pad * (D * D + 2 * D * KPAD + 4 * D * D + 2 * D * d_ffn)
    cost = pl.CostEstimate(
        flops=int(flops),
        transcendentals=int(N_pad * (KPAD + 2)),
        bytes_accessed=int(4 * N_pad * 2 * D + 2 * N_pad * KPAD + weight_bytes))

    sim2stext_p, attn_p = pl.pallas_call(
        _spa_main_kernel,
        out_shape=(jax.ShapeDtypeStruct((N_pad, D), f32),        # sim2stext
                   jax.ShapeDtypeStruct((N_pad, KPAD), bf16)),   # attention weights
        grid=grid,
        in_specs=in_specs,
        out_specs=(row_spec(D), row_spec(KPAD)),
        compiler_params=pltpu.CompilerParams(
            dimension_semantics=("parallel",),
            vmem_limit_bytes=int(vmem_limit)),
        cost_estimate=cost,
    )(visual_p, kT, v_full, key_mask, wq_s,
      w12, b12, w3, params["b3"],
      wf1, params["bf1"], wf2, params["bf2"],
      params["ln_g"], params["ln_b"])

    sim2stext = sim2stext_p[:N, :]
    attn = attn_p[:N, :n_keys].astype(f32)
    # Match torch shapes: attn carries a leading (n_head * batch) = 1 dim.
    return attn[None, :, :], {"sim2stext": sim2stext, "text_feat": text_feat_full}


# ----------------------------------------------------------------------------
# Deterministic parameter construction (synthetic, mirrors module __init__ shapes)
# ----------------------------------------------------------------------------
def make_params(key, input_size, semantic_dim, d_ffn=1024, init_scale=0.02):
    D, S = input_size, semantic_dim
    ks = jax.random.split(key, 16)

    def nrm(k, shape, std):
        return std * jax.random.normal(k, shape, jnp.float32)

    p = {}
    # key / value projections (weights stored as [in, out])
    p["wkp"] = nrm(ks[0], (S, D), 0.02)
    p["bkp"] = jnp.zeros((1, D), jnp.float32)
    p["wvp"] = nrm(ks[1], (S, D), 0.02)
    p["bvp"] = jnp.zeros((1, D), jnp.float32)
    # attention linears: _init_parameters re-inits them to N(0, 0.02), bias 0
    p["wq"] = nrm(ks[2], (D, D), init_scale)
    p["wk"] = nrm(ks[3], (D, D), init_scale)
    p["wv"] = nrm(ks[4], (D, D), init_scale)
    p["dummy"] = jax.random.normal(ks[5], (1, D), jnp.float32)   # nn.init.normal_
    p["w1"] = nrm(ks[6], (D, D // 2), init_scale)
    p["b1"] = jnp.zeros((1, D // 2), jnp.float32)
    p["w2"] = nrm(ks[7], (D, D // 2), init_scale)
    p["b2"] = jnp.zeros((1, D // 2), jnp.float32)
    # linear3 over concat([o1, o2, residual]) of width 2D -> split in 3 chunks
    p["w3a"] = nrm(ks[8], (D // 2, D), init_scale)
    p["w3b"] = nrm(ks[9], (D // 2, D), init_scale)
    p["w3c"] = nrm(ks[10], (D, D), init_scale)
    p["b3"] = jnp.zeros((1, D), jnp.float32)
    # FFN
    p["wf1"] = nrm(ks[11], (D, d_ffn), init_scale)
    p["bf1"] = jnp.zeros((1, d_ffn), jnp.float32)
    p["wf2"] = nrm(ks[12], (d_ffn, D), init_scale)
    p["bf2"] = jnp.zeros((1, D), jnp.float32)
    # LayerNorm (torch default: gamma=1, beta=0)
    p["ln_g"] = jnp.ones((1, D), jnp.float32)
    p["ln_b"] = jnp.zeros((1, D), jnp.float32)
    return p


def make_text_embed(key, num_classes, semantic_dim):
    """Synthetic class embeddings + bg vector orthogonal to their mean."""
    # TODO(synk): real module loads GloVe/CLIP class embeddings; synthetic stand-in.
    k1, k2 = jax.random.split(key)
    embed = jax.random.normal(k1, (num_classes, semantic_dim), jnp.float32)
    avg = jnp.mean(embed, axis=0, keepdims=True)
    r = jax.random.normal(k2, (1, semantic_dim), jnp.float32)
    r = r - (jnp.sum(r * avg) / jnp.sum(avg * avg)) * avg
    bg = r / jnp.linalg.norm(r)
    return jnp.concatenate([embed, bg], axis=0)      # (num_classes + 1, S)


# ----------------------------------------------------------------------------
# Pure-JAX reference (mirrors the kernel's bf16 cast points for a tight check)
# ----------------------------------------------------------------------------
def reference(visual, text, p):
    f32, bf16 = jnp.float32, jnp.bfloat16
    D = visual.shape[-1]

    kf = jax.nn.relu(text @ p["wkp"] + p["bkp"])
    vf = jax.nn.relu(text @ p["wvp"] + p["bvp"])
    k = kf @ p["wk"]
    v = vf @ p["wv"]
    k_full = jnp.concatenate([k, p["dummy"]], axis=0).astype(bf16)
    v_full = jnp.concatenate([v, jnp.zeros((1, D), f32)], axis=0).astype(bf16)

    inv_temp = 1.0 / jnp.sqrt(jnp.asarray(D, f32))
    wq_s = (p["wq"] * inv_temp).astype(bf16)
    q = jnp.dot(visual.astype(bf16), wq_s, preferred_element_type=f32)
    s = jnp.dot(q.astype(bf16), k_full.T, preferred_element_type=f32)
    attn = jax.nn.softmax(s, axis=-1)
    out = jnp.dot(attn.astype(bf16), v_full, preferred_element_type=f32)

    def lin(x, w, b):
        return jnp.dot(x.astype(bf16), w.astype(bf16),
                       preferred_element_type=f32) + b

    o1 = jax.nn.relu(lin(out * visual, p["w1"], p["b1"]))
    o2 = jax.nn.relu(lin(visual - out, p["w2"], p["b2"]))
    out3 = (jnp.dot(o1.astype(bf16), p["w3a"].astype(bf16), preferred_element_type=f32)
            + jnp.dot(o2.astype(bf16), p["w3b"].astype(bf16), preferred_element_type=f32)
            + jnp.dot(visual.astype(bf16), p["w3c"].astype(bf16), preferred_element_type=f32)
            + p["b3"])
    h = jax.nn.relu(lin(out3, p["wf1"], p["bf1"]))
    t = out3 + lin(h, p["wf2"], p["bf2"])
    mu = jnp.mean(t, axis=-1, keepdims=True)
    var = jnp.mean((t - mu) ** 2, axis=-1, keepdims=True)
    tn = (t - mu) * jax.lax.rsqrt(var + 1e-5) * p["ln_g"] + p["ln_b"]
    return jax.nn.relu(tn), attn


if __name__ == "__main__":
    D = 128           # input_size (d_model)
    S = 64            # semantic_dim (synthetic; glove=300 / clip=512 in real cfg)
    NUM_CLASSES = 15  # -> K = 16 text tokens incl. background

    root = jax.random.PRNGKey(0)
    k_vis, k_txt, k_par = jax.random.split(root, 3)

    text_feat = make_text_embed(k_txt, NUM_CLASSES, S)
    params = make_params(k_par, D, S)

    # Small proposal count (single adaptive tile, grid of 1).
    N = 8
    visual_feat = jax.random.normal(k_vis, (N, D), jnp.float32)
    attn, out = sematic_proposal_attention(visual_feat, text_feat, params)
    jax.block_until_ready((attn, out))

    ref_sim, ref_attn = reference(visual_feat, text_feat, params)
    assert out["sim2stext"].shape == (N, D)
    assert attn.shape == (1, N, NUM_CLASSES + 2)
    assert out["text_feat"].shape == (NUM_CLASSES + 1, S)
    assert jnp.allclose(out["sim2stext"], ref_sim, atol=1e-2, rtol=1e-2), "sim2stext mismatch"
    assert jnp.allclose(attn[0], ref_attn, atol=1e-2, rtol=1e-2), "attn mismatch"

    # Larger proposal count: exercises the multi-tile ("parallel" grid >= 2) path.
    N2 = 200
    visual2 = jax.random.normal(jax.random.PRNGKey(7), (N2, D), jnp.float32)
    attn2, out2 = sematic_proposal_attention(visual2, text_feat, params)
    jax.block_until_ready((attn2, out2))
    ref_sim2, ref_attn2 = reference(visual2, text_feat, params)
    assert out2["sim2stext"].shape == (N2, D)
    assert attn2.shape == (1, N2, NUM_CLASSES + 2)
    assert jnp.allclose(out2["sim2stext"], ref_sim2, atol=1e-2, rtol=1e-2), "sim2stext mismatch (N=200)"
    assert jnp.allclose(attn2[0], ref_attn2, atol=1e-2, rtol=1e-2), "attn mismatch (N=200)"

    print("KERNEL_OK")
</pallas_src>

<mosaic_0001>
module attributes {stable_mosaic.version = 11 : i64} {
  func.func @_spa_main_kernel(%arg0: i32, %arg1: memref<8x128xf32, #tpu.memory_space<vmem>>, %arg2: memref<128x128xbf16, #tpu.memory_space<vmem>>, %arg3: memref<128x128xbf16, #tpu.memory_space<vmem>>, %arg4: memref<1x128xf32, #tpu.memory_space<vmem>>, %arg5: memref<128x128xbf16, #tpu.memory_space<vmem>>, %arg6: memref<256x128xbf16, #tpu.memory_space<vmem>>, %arg7: memref<1x128xf32, #tpu.memory_space<vmem>>, %arg8: memref<256x128xbf16, #tpu.memory_space<vmem>>, %arg9: memref<1x128xf32, #tpu.memory_space<vmem>>, %arg10: memref<128x1024xbf16, #tpu.memory_space<vmem>>, %arg11: memref<1x1024xf32, #tpu.memory_space<vmem>>, %arg12: memref<1024x128xbf16, #tpu.memory_space<vmem>>, %arg13: memref<1x128xf32, #tpu.memory_space<vmem>>, %arg14: memref<1x128xf32, #tpu.memory_space<vmem>>, %arg15: memref<1x128xf32, #tpu.memory_space<vmem>>, %arg16: memref<8x128xf32, #tpu.memory_space<vmem>>, %arg17: memref<8x128xbf16, #tpu.memory_space<vmem>>) attributes {dimension_semantics = [#tpu.dimension_semantics<parallel>], iteration_bounds = array<i64: 1>, scalar_prefetch = 0 : i64, scratch_operands = 0 : i64, tpu.core_type = #tpu.core_type<tc>, window_params = [{transform_indices = @transform_0, window_bounds = array<i64: 8, 128>}, {pipeline_mode = #tpu.pipeline_mode<synchronous>, transform_indices = @transform_1, window_bounds = array<i64: 128, 128>}, {pipeline_mode = #tpu.pipeline_mode<synchronous>, transform_indices = @transform_2, window_bounds = array<i64: 128, 128>}, {pipeline_mode = #tpu.pipeline_mode<synchronous>, transform_indices = @transform_3, window_bounds = array<i64: 1, 128>}, {pipeline_mode = #tpu.pipeline_mode<synchronous>, transform_indices = @transform_4, window_bounds = array<i64: 128, 128>}, {pipeline_mode = #tpu.pipeline_mode<synchronous>, transform_indices = @transform_5, window_bounds = array<i64: 256, 128>}, {pipeline_mode = #tpu.pipeline_mode<synchronous>, transform_indices = @transform_6, window_bounds = array<i64: 1, 128>}, {pipeline_mode = #tpu.pipeline_mode<synchronous>, transform_indices = @transform_7, window_bounds = array<i64: 256, 128>}, {pipeline_mode = #tpu.pipeline_mode<synchronous>, transform_indices = @transform_8, window_bounds = array<i64: 1, 128>}, {pipeline_mode = #tpu.pipeline_mode<synchronous>, transform_indices = @transform_9, window_bounds = array<i64: 128, 1024>}, {pipeline_mode = #tpu.pipeline_mode<synchronous>, transform_indices = @transform_10, window_bounds = array<i64: 1, 1024>}, {pipeline_mode = #tpu.pipeline_mode<synchronous>, transform_indices = @transform_11, window_bounds = array<i64: 1024, 128>}, {pipeline_mode = #tpu.pipeline_mode<synchronous>, transform_indices = @transform_12, window_bounds = array<i64: 1, 128>}, {pipeline_mode = #tpu.pipeline_mode<synchronous>, transform_indices = @transform_13, window_bounds = array<i64: 1, 128>}, {pipeline_mode = #tpu.pipeline_mode<synchronous>, transform_indices = @transform_14, window_bounds = array<i64: 1, 128>}, {transform_indices = @transform_15, window_bounds = array<i64: 8, 128>}, {transform_indices = @transform_16, window_bounds = array<i64: 8, 128>}]} {
    %c0 = arith.constant 0 : index
    %c0_0 = arith.constant 0 : index
    %0 = vector.load %arg1[%c0, %c0_0] : memref<8x128xf32, #tpu.memory_space<vmem>>, vector<8x128xf32>
    %1 = arith.truncf %0 : vector<8x128xf32> to vector<8x128xbf16>
    %c0_1 = arith.constant 0 : index
    %c0_2 = arith.constant 0 : index
    %2 = vector.load %arg5[%c0_1, %c0_2] : memref<128x128xbf16, #tpu.memory_space<vmem>>, vector<128x128xbf16>
    %cst = arith.constant dense<0.000000e+00> : vector<8x128xf32>
    %3 = tpu.matmul %1, %2, %cst {dimension_numbers = #tpu.dot_dimension_numbers<[1], [0], [0], [1], [0, 0, 1, 1], [], []>} : vector<8x128xbf16>, vector<128x128xbf16>, vector<8x128xf32> -> vector<8x128xf32>
    %4 = arith.truncf %3 : vector<8x128xf32> to vector<8x128xbf16>
    %c0_3 = arith.constant 0 : index
    %c0_4 = arith.constant 0 : index
    %5 = vector.load %arg2[%c0_3, %c0_4] : memref<128x128xbf16, #tpu.memory_space<vmem>>, vector<128x128xbf16>
    %cst_5 = arith.constant dense<0.000000e+00> : vector<8x128xf32>
    %6 = tpu.matmul %4, %5, %cst_5 {dimension_numbers = #tpu.dot_dimension_numbers<[1], [0], [0], [1], [0, 0, 1, 1], [], []>} : vector<8x128xbf16>, vector<128x128xbf16>, vector<8x128xf32> -> vector<8x128xf32>
    %c0_6 = arith.constant 0 : index
    %c0_7 = arith.constant 0 : index
    %7 = vector.load %arg4[%c0_6, %c0_7] : memref<1x128xf32, #tpu.memory_space<vmem>>, vector<1x128xf32>
    %8 = vector.broadcast %7 : vector<1x128xf32> to vector<8x128xf32>
    %9 = arith.addf %6, %8 : vector<8x128xf32>
    %cst_8 = arith.constant dense<0xFF800000> : vector<8xf32>
    %10 = vector.multi_reduction <maximumf>, %9, %cst_8 [1] : vector<8x128xf32> to vector<8xf32>
    %11 = vector.shape_cast %10 : vector<8xf32> to vector<8x1xf32>
    %12 = vector.broadcast %11 : vector<8x1xf32> to vector<8x128xf32>
    %13 = arith.subf %9, %12 : vector<8x128xf32>
    %14 = math.exp %13 : vector<8x128xf32>
    %cst_9 = arith.constant dense<0.000000e+00> : vector<8xf32>
    %15 = vector.multi_reduction <add>, %14, %cst_9 [1] : vector<8x128xf32> to vector<8xf32>
    %16 = vector.shape_cast %15 : vector<8xf32> to vector<8x1xf32>
    %17 = tpu.reciprocal %16 {approx = true} : vector<8x1xf32> -> vector<8x1xf32>
    %18 = vector.broadcast %17 : vector<8x1xf32> to vector<8x128xf32>
    %19 = arith.mulf %14, %18 : vector<8x128xf32>
    %20 = arith.truncf %19 : vector<8x128xf32> to vector<8x128xbf16>
    %c0_10 = arith.constant 0 : index
    %c0_11 = arith.constant 0 : index
    %21 = vector.load %arg17[%c0_10, %c0_11] : memref<8x128xbf16, #tpu.memory_space<vmem>>, vector<8x128xbf16>
    tpu.vector_store %arg17[%c0_10, %c0_11], %20 {strides = array<i32>} : memref<8x128xbf16, #tpu.memory_space<vmem>>, vector<8x128xbf16>,
    %22 = arith.truncf %19 : vector<8x128xf32> to vector<8x128xbf16>
    %c0_12 = arith.constant 0 : index
    %c0_13 = arith.constant 0 : index
    %23 = vector.load %arg3[%c0_12, %c0_13] : memref<128x128xbf16, #tpu.memory_space<vmem>>, vector<128x128xbf16>
    %cst_14 = arith.constant dense<0.000000e+00> : vector<8x128xf32>
    %24 = tpu.matmul %22, %23, %cst_14 {dimension_numbers = #tpu.dot_dimension_numbers<[1], [0], [0], [1], [0, 0, 1, 1], [], []>} : vector<8x128xbf16>, vector<128x128xbf16>, vector<8x128xf32> -> vector<8x128xf32>
    %25 = arith.mulf %24, %0 : vector<8x128xf32>
    %26 = arith.truncf %25 : vector<8x128xf32> to vector<8x128xbf16>
    %27 = arith.subf %0, %24 : vector<8x128xf32>
    %28 = arith.truncf %27 : vector<8x128xf32> to vector<8x128xbf16>
    %29 = tpu.concatenate %26, %28 in 1 : vector<8x128xbf16>, vector<8x128xbf16> -> vector<8x256xbf16>
    %c0_15 = arith.constant 0 : index
    %c0_16 = arith.constant 0 : index
    %30 = vector.load %arg6[%c0_15, %c0_16] : memref<256x128xbf16, #tpu.memory_space<vmem>>, vector<256x128xbf16>
    %cst_17 = arith.constant dense<0.000000e+00> : vector<8x128xf32>
    %31 = tpu.matmul %29, %30, %cst_17 {dimension_numbers = #tpu.dot_dimension_numbers<[1], [0], [0], [1], [0, 0, 1, 1], [], []>} : vector<8x256xbf16>, vector<256x128xbf16>, vector<8x128xf32> -> vector<8x128xf32>
    %c0_18 = arith.constant 0 : index
    %c0_19 = arith.constant 0 : index
    %32 = vector.load %arg7[%c0_18, %c0_19] : memref<1x128xf32, #tpu.memory_space<vmem>>, vector<1x128xf32>
    %33 = vector.broadcast %32 : vector<1x128xf32> to vector<8x128xf32>
    %34 = arith.addf %31, %33 : vector<8x128xf32>
    %cst_20 = arith.constant 0.000000e+00 : f32
    %35 = vector.broadcast %cst_20 : f32 to vector<8x128xf32>
    %36 = arith.maximumf %34, %35 : vector<8x128xf32>
    %37 = arith.truncf %36 : vector<8x128xf32> to vector<8x128xbf16>
    %38 = tpu.concatenate %37, %1 in 1 : vector<8x128xbf16>, vector<8x128xbf16> -> vector<8x256xbf16>
    %c0_21 = arith.constant 0 : index
    %c0_22 = arith.constant 0 : index
    %39 = vector.load %arg8[%c0_21, %c0_22] : memref<256x128xbf16, #tpu.memory_space<vmem>>, vector<256x128xbf16>
    %cst_23 = arith.constant dense<0.000000e+00> : vector<8x128xf32>
    %40 = tpu.matmul %38, %39, %cst_23 {dimension_numbers = #tpu.dot_dimension_numbers<[1], [0], [0], [1], [0, 0, 1, 1], [], []>} : vector<8x256xbf16>, vector<256x128xbf16>, vector<8x128xf32> -> vector<8x128xf32>
    %c0_24 = arith.constant 0 : index
    %c0_25 = arith.constant 0 : index
    %41 = vector.load %arg9[%c0_24, %c0_25] : memref<1x128xf32, #tpu.memory_space<vmem>>, vector<1x128xf32>
    %42 = vector.broadcast %41 : vector<1x128xf32> to vector<8x128xf32>
    %43 = arith.addf %40, %42 : vector<8x128xf32>
    %44 = arith.truncf %43 : vector<8x128xf32> to vector<8x128xbf16>
    %c0_26 = arith.constant 0 : index
    %c0_27 = arith.constant 0 : index
    %45 = vector.load %arg10[%c0_26, %c0_27] : memref<128x1024xbf16, #tpu.memory_space<vmem>>, vector<128x1024xbf16>
    %cst_28 = arith.constant dense<0.000000e+00> : vector<8x1024xf32>
    %46 = tpu.matmul %44, %45, %cst_28 {dimension_numbers = #tpu.dot_dimension_numbers<[1], [0], [0], [1], [0, 0, 1, 1], [], []>} : vector<8x128xbf16>, vector<128x1024xbf16>, vector<8x1024xf32> -> vector<8x1024xf32>
    %c0_29 = arith.constant 0 : index
    %c0_30 = arith.constant 0 : index
    %47 = vector.load %arg11[%c0_29, %c0_30] : memref<1x1024xf32, #tpu.memory_space<vmem>>, vector<1x1024xf32>
    %48 = vector.broadcast %47 : vector<1x1024xf32> to vector<8x1024xf32>
    %49 = arith.addf %46, %48 : vector<8x1024xf32>
    %cst_31 = arith.constant 0.000000e+00 : f32
    %50 = vector.broadcast %cst_31 : f32 to vector<8x1024xf32>
    %51 = arith.maximumf %49, %50 : vector<8x1024xf32>
    %52 = arith.truncf %51 : vector<8x1024xf32> to vector<8x1024xbf16>
    %c0_32 = arith.constant 0 : index
    %c0_33 = arith.constant 0 : index
    %53 = vector.load %arg12[%c0_32, %c0_33] : memref<1024x128xbf16, #tpu.memory_space<vmem>>, vector<1024x128xbf16>
    %cst_34 = arith.constant dense<0.000000e+00> : vector<8x128xf32>
    %54 = tpu.matmul %52, %53, %cst_34 {dimension_numbers = #tpu.dot_dimension_numbers<[1], [0], [0], [1], [0, 0, 1, 1], [], []>} : vector<8x1024xbf16>, vector<1024x128xbf16>, vector<8x128xf32> -> vector<8x128xf32>
    %55 = arith.addf %43, %54 : vector<8x128xf32>
    %c0_35 = arith.constant 0 : index
    %c0_36 = arith.constant 0 : index
    %56 = vector.load %arg13[%c0_35, %c0_36] : memref<1x128xf32, #tpu.memory_space<vmem>>, vector<1x128xf32>
    %57 = vector.broadcast %56 : vector<1x128xf32> to vector<8x128xf32>
    %58 = arith.addf %55, %57 : vector<8x128xf32>
    %cst_37 = arith.constant dense<0.000000e+00> : vector<8xf32>
    %59 = vector.multi_reduction <add>, %58, %cst_37 [1] : vector<8x128xf32> to vector<8xf32>
    %60 = vector.shape_cast %59 : vector<8xf32> to vector<8x1xf32>
    %cst_38 = arith.constant 7.812500e-03 : f32
    %61 = vector.broadcast %cst_38 : f32 to vector<8x1xf32>
    %62 = arith.mulf %60, %61 : vector<8x1xf32>
    %63 = vector.broadcast %62 : vector<8x1xf32> to vector<8x128xf32>
    %64 = arith.subf %58, %63 : vector<8x128xf32>
    %65 = arith.mulf %64, %64 : vector<8x128xf32>
    %cst_39 = arith.constant dense<0.000000e+00> : vector<8xf32>
    %66 = vector.multi_reduction <add>, %65, %cst_39 [1] : vector<8x128xf32> to vector<8xf32>
    %67 = vector.shape_cast %66 : vector<8xf32> to vector<8x1xf32>
    %cst_40 = arith.constant 7.812500e-03 : f32
    %68 = vector.broadcast %cst_40 : f32 to vector<8x1xf32>
    %69 = arith.mulf %67, %68 : vector<8x1xf32>
    %cst_41 = arith.constant 9.99999974E-6 : f32
    %70 = vector.broadcast %cst_41 : f32 to vector<8x1xf32>
    %71 = arith.addf %69, %70 : vector<8x1xf32>
    %72 = math.rsqrt %71 : vector<8x1xf32>
    %73 = vector.broadcast %72 : vector<8x1xf32> to vector<8x128xf32>
    %74 = arith.mulf %64, %73 : vector<8x128xf32>
    %c0_42 = arith.constant 0 : index
    %c0_43 = arith.constant 0 : index
    %75 = vector.load %arg14[%c0_42, %c0_43] : memref<1x128xf32, #tpu.memory_space<vmem>>, vector<1x128xf32>
    %76 = vector.broadcast %75 : vector<1x128xf32> to vector<8x128xf32>
    %77 = arith.mulf %74, %76 : vector<8x128xf32>
    %c0_44 = arith.constant 0 : index
    %c0_45 = arith.constant 0 : index
    %78 = vector.load %arg15[%c0_44, %c0_45] : memref<1x128xf32, #tpu.memory_space<vmem>>, vector<1x128xf32>
    %79 = vector.broadcast %78 : vector<1x128xf32> to vector<8x128xf32>
    %80 = arith.addf %77, %79 : vector<8x128xf32>
    %cst_46 = arith.constant 0.000000e+00 : f32
    %81 = vector.broadcast %cst_46 : f32 to vector<8x128xf32>
    %82 = arith.maximumf %80, %81 : vector<8x128xf32>
    %c0_47 = arith.constant 0 : index
    %c0_48 = arith.constant 0 : index
    %83 = vector.load %arg16[%c0_47, %c0_48] : memref<8x128xf32, #tpu.memory_space<vmem>>, vector<8x128xf32>
    tpu.vector_store %arg16[%c0_47, %c0_48], %82 {strides = array<i32>} : memref<8x128xf32, #tpu.memory_space<vmem>>, vector<8x128xf32>,
    return
  }
  func.func @transform_0(%arg0: i32) -> (i32, i32) {
    %c0_i32 = arith.constant 0 : i32
    %c0_i32_0 = arith.constant 0 : i32
    return %arg0, %c0_i32 : i32, i32
  }
  func.func @transform_1(%arg0: i32) -> (i32, i32) {
    %c0_i32 = arith.constant 0 : i32
    %c0_i32_0 = arith.constant 0 : i32
    %c0_i32_1 = arith.constant 0 : i32
    return %c0_i32, %c0_i32_0 : i32, i32
  }
  func.func @transform_2(%arg0: i32) -> (i32, i32) {
    %c0_i32 = arith.constant 0 : i32
    %c0_i32_0 = arith.constant 0 : i32
    %c0_i32_1 = arith.constant 0 : i32
    return %c0_i32, %c0_i32_0 : i32, i32
  }
  func.func @transform_3(%arg0: i32) -> (i32, i32) {
    %c0_i32 = arith.constant 0 : i32
    %c0_i32_0 = arith.constant 0 : i32
    %c0_i32_1 = arith.constant 0 : i32
    return %c0_i32, %c0_i32_0 : i32, i32
  }
  func.func @transform_4(%arg0: i32) -> (i32, i32) {
    %c0_i32 = arith.constant 0 : i32
    %c0_i32_0 = arith.constant 0 : i32
    %c0_i32_1 = arith.constant 0 : i32
    return %c0_i32, %c0_i32_0 : i32, i32
  }
  func.func @transform_5(%arg0: i32) -> (i32, i32) {
    %c0_i32 = arith.constant 0 : i32
    %c0_i32_0 = arith.constant 0 : i32
    %c0_i32_1 = arith.constant 0 : i32
    return %c0_i32, %c0_i32_0 : i32, i32
  }
  func.func @transform_6(%arg0: i32) -> (i32, i32) {
    %c0_i32 = arith.constant 0 : i32
    %c0_i32_0 = arith.constant 0 : i32
    %c0_i32_1 = arith.constant 0 : i32
    return %c0_i32, %c0_i32_0 : i32, i32
  }
  func.func @transform_7(%arg0: i32) -> (i32, i32) {
    %c0_i32 = arith.constant 0 : i32
    %c0_i32_0 = arith.constant 0 : i32
    %c0_i32_1 = arith.constant 0 : i32
    return %c0_i32, %c0_i32_0 : i32, i32
  }
  func.func @transform_8(%arg0: i32) -> (i32, i32) {
    %c0_i32 = arith.constant 0 : i32
    %c0_i32_0 = arith.constant 0 : i32
    %c0_i32_1 = arith.constant 0 : i32
    return %c0_i32, %c0_i32_0 : i32, i32
  }
  func.func @transform_9(%arg0: i32) -> (i32, i32) {
    %c0_i32 = arith.constant 0 : i32
    %c0_i32_0 = arith.constant 0 : i32
    %c0_i32_1 = arith.constant 0 : i32
    return %c0_i32, %c0_i32_0 : i32, i32
  }
  func.func @transform_10(%arg0: i32) -> (i32, i32) {
    %c0_i32 = arith.constant 0 : i32
    %c0_i32_0 = arith.constant 0 : i32
    %c0_i32_1 = arith.constant 0 : i32
    return %c0_i32, %c0_i32_0 : i32, i32
  }
  func.func @transform_11(%arg0: i32) -> (i32, i32) {
    %c0_i32 = arith.constant 0 : i32
    %c0_i32_0 = arith.constant 0 : i32
    %c0_i32_1 = arith.constant 0 : i32
    return %c0_i32, %c0_i32_0 : i32, i32
  }
  func.func @transform_12(%arg0: i32) -> (i32, i32) {
    %c0_i32 = arith.constant 0 : i32
    %c0_i32_0 = arith.constant 0 : i32
    %c0_i32_1 = arith.constant 0 : i32
    return %c0_i32, %c0_i32_0 : i32, i32
  }
  func.func @transform_13(%arg0: i32) -> (i32, i32) {
    %c0_i32 = arith.constant 0 : i32
    %c0_i32_0 = arith.constant 0 : i32
    %c0_i32_1 = arith.constant 0 : i32
    return %c0_i32, %c0_i32_0 : i32, i32
  }
  func.func @transform_14(%arg0: i32) -> (i32, i32) {
    %c0_i32 = arith.constant 0 : i32
    %c0_i32_0 = arith.constant 0 : i32
    %c0_i32_1 = arith.constant 0 : i32
    return %c0_i32, %c0_i32_0 : i32, i32
  }
  func.func @transform_15(%arg0: i32) -> (i32, i32) {
    %c0_i32 = arith.constant 0 : i32
    %c0_i32_0 = arith.constant 0 : i32
    return %arg0, %c0_i32 : i32, i32
  }
  func.func @transform_16(%arg0: i32) -> (i32, i32) {
    %c0_i32 = arith.constant 0 : i32
    %c0_i32_0 = arith.constant 0 : i32
    return %arg0, %c0_i32 : i32, i32
  }
}

</mosaic_0001>

<llo_original>
// kernel: sematic_proposal_attention.1
$region0: #{sematic_proposal_attention.1}
  #allocation0 [shape = 'u32[]', space=smem, size = 0x4, offset = 0x4, fixed_abs, tag = 'smem constant byte address 0x4 - core index']
  #allocation1 [shape = 'u32[144,128]{1,0:T(1,128)}', space=vmem, size = 0x12000, scoped, tag = 'internal scratch']
  %s0 = inlined_call_operand.vmem [shape: f32[8,128], index: 0, kind: input, shape index: {}]
  %s1 = inlined_call_operand.vmem [shape: bf16[128,128], index: 1, kind: input, shape index: {}]
  %s2 = inlined_call_operand.vmem [shape: bf16[128,128], index: 2, kind: input, shape index: {}]
  %s3 = inlined_call_operand.vmem [shape: f32[1,128], index: 3, kind: input, shape index: {}]
  %s4 = inlined_call_operand.vmem [shape: bf16[128,128], index: 4, kind: input, shape index: {}]
  %s5 = inlined_call_operand.vmem [shape: bf16[256,128], index: 5, kind: input, shape index: {}]
  %s6 = inlined_call_operand.vmem [shape: f32[1,128], index: 6, kind: input, shape index: {}]
  %s7 = inlined_call_operand.vmem [shape: bf16[256,128], index: 7, kind: input, shape index: {}]
  %s8 = inlined_call_operand.vmem [shape: f32[1,128], index: 8, kind: input, shape index: {}]
  %s9 = inlined_call_operand.vmem [shape: bf16[128,1024], index: 9, kind: input, shape index: {}]
  %s10 = inlined_call_operand.vmem [shape: f32[1,1024], index: 10, kind: input, shape index: {}]
  %s11 = inlined_call_operand.vmem [shape: bf16[1024,128], index: 11, kind: input, shape index: {}]
  %s12 = inlined_call_operand.vmem [shape: f32[1,128], index: 12, kind: input, shape index: {}]
  %s13 = inlined_call_operand.vmem [shape: f32[1,128], index: 13, kind: input, shape index: {}]
  %s14 = inlined_call_operand.vmem [shape: f32[1,128], index: 14, kind: input, shape index: {}]
  %s15 = inlined_call_operand.hbm [shape: f32[8,128], index: 15, kind: output, shape index: {0}]
  %s16 = inlined_call_operand.vmem [shape: bf16[8,128], index: 16, kind: output, shape index: {1}]
  %17 = xla_tuple %s15, %s16
  %s18 = sld [smem:[#allocation0]]
  $region78: #{sematic_proposal_attention.1} parent=0
    _
  %s20 = ssub.s32 1, %s18
  %s21 = scalar_select 0, %s20, %s18
  $region1: #{sematic_proposal_attention.1} parent=0
    #allocation2 [shape = 'u8[4096]{0}', space=vmem, size = 0x1000, scoped, tag = 'output window, operand 0, single buffered']
    #allocation3 [shape = 's32[1]{0}', space=sflag, size = 0x4, scoped, tag = 'scoped memory for sematic_proposal_attention.1']
    %22 = vsyncpa [#allocation3], 0
    // Predicated region
    $region2: #{sematic_proposal_attention.1} parent=1 // pred_check
      _
    $region3: #{sematic_proposal_attention.1} parent=1 // pred_check_branch
      %24 = sbr.rel (0) target = $region5
    $region4: #{sematic_proposal_attention.1} parent=1 // pred_region
      _
    $region5: #{sematic_proposal_attention.1} parent=1 // pred_fallthru
      _
    // Predicated region
    $region6: #{sematic_proposal_attention.1} parent=1 // pred_check
      _
    $region7: #{sematic_proposal_attention.1} parent=1 // pred_check_branch
      %26 = sbr.rel (0) target = $region9
    $region8: #{sematic_proposal_attention.1} parent=1 // pred_region
      _
    $region9: #{sematic_proposal_attention.1} parent=1 // pred_fallthru
      _
    // Predicated region
    $region10: #{sematic_proposal_attention.1} parent=1 // pred_check
      _
    $region11: #{sematic_proposal_attention.1} parent=1 // pred_check_branch
      %28 = sbr.rel (0) target = $region13
    $region12: #{sematic_proposal_attention.1} parent=1 // pred_region
      _
    $region13: #{sematic_proposal_attention.1} parent=1 // pred_fallthru
      _
    // Predicated region
    $region14: #{sematic_proposal_attention.1} parent=1 // pred_check
      _
    $region15: #{sematic_proposal_attention.1} parent=1 // pred_check_branch
      %30 = sbr.rel (0) target = $region17
    $region16: #{sematic_proposal_attention.1} parent=1 // pred_region
      _
    $region17: #{sematic_proposal_attention.1} parent=1 // pred_fallthru
      _
    // Predicated region
    $region18: #{sematic_proposal_attention.1} parent=1 // pred_check
      _
    $region19: #{sematic_proposal_attention.1} parent=1 // pred_check_branch
      %32 = sbr.rel (0) target = $region21
    $region20: #{sematic_proposal_attention.1} parent=1 // pred_region
      _
    $region21: #{sematic_proposal_attention.1} parent=1 // pred_fallthru
      _
    // Predicated region
    $region22: #{sematic_proposal_attention.1} parent=1 // pred_check
      _
    $region23: #{sematic_proposal_attention.1} parent=1 // pred_check_branch
      %34 = sbr.rel (0) target = $region25
    $region24: #{sematic_proposal_attention.1} parent=1 // pred_region
      _
    $region25: #{sematic_proposal_attention.1} parent=1 // pred_fallthru
      _
    // Predicated region
    $region26: #{sematic_proposal_attention.1} parent=1 // pred_check
      _
    $region27: #{sematic_proposal_attention.1} parent=1 // pred_check_branch
      %36 = sbr.rel (0) target = $region29
    $region28: #{sematic_proposal_attention.1} parent=1 // pred_region
      _
    $region29: #{sematic_proposal_attention.1} parent=1 // pred_fallthru
      _
    // Predicated region
    $region30: #{sematic_proposal_attention.1} parent=1 // pred_check
      _
    $region31: #{sematic_proposal_attention.1} parent=1 // pred_check_branch
      %38 = sbr.rel (0) target = $region33
    $region32: #{sematic_proposal_attention.1} parent=1 // pred_region
      _
    $region33: #{sematic_proposal_attention.1} parent=1 // pred_fallthru
      _
    // Predicated region
    $region34: #{sematic_proposal_attention.1} parent=1 // pred_check
      _
    $region35: #{sematic_proposal_attention.1} parent=1 // pred_check_branch
      %40 = sbr.rel (0) target = $region37
    $region36: #{sematic_proposal_attention.1} parent=1 // pred_region
      _
    $region37: #{sematic_proposal_attention.1} parent=1 // pred_fallthru
      _
    // Predicated region
    $region38: #{sematic_proposal_attention.1} parent=1 // pred_check
      _
    $region39: #{sematic_proposal_attention.1} parent=1 // pred_check_branch
      %42 = sbr.rel (0) target = $region41
    $region40: #{sematic_proposal_attention.1} parent=1 // pred_region
      _
    $region41: #{sematic_proposal_attention.1} parent=1 // pred_fallthru
      _
    // Predicated region
    $region42: #{sematic_proposal_attention.1} parent=1 // pred_check
      _
    $region43: #{sematic_proposal_attention.1} parent=1 // pred_check_branch
      %44 = sbr.rel (0) target = $region45
    $region44: #{sematic_proposal_attention.1} parent=1 // pred_region
      _
    $region45: #{sematic_proposal_attention.1} parent=1 // pred_fallthru
      _
    // Predicated region
    $region46: #{sematic_proposal_attention.1} parent=1 // pred_check
      _
    $region47: #{sematic_proposal_attention.1} parent=1 // pred_check_branch
      %46 = sbr.rel (0) target = $region49
    $region48: #{sematic_proposal_attention.1} parent=1 // pred_region
      _
    $region49: #{sematic_proposal_attention.1} parent=1 // pred_fallthru
      _
    // Predicated region
    $region50: #{sematic_proposal_attention.1} parent=1 // pred_check
      _
    $region51: #{sematic_proposal_attention.1} parent=1 // pred_check_branch
      %48 = sbr.rel (0) target = $region53
    $region52: #{sematic_proposal_attention.1} parent=1 // pred_region
      _
    $region53: #{sematic_proposal_attention.1} parent=1 // pred_fallthru
      _
    // Predicated region
    $region54: #{sematic_proposal_attention.1} parent=1 // pred_check
      _
    $region55: #{sematic_proposal_attention.1} parent=1 // pred_check_branch
      %50 = sbr.rel (0) target = $region57
    $region56: #{sematic_proposal_attention.1} parent=1 // pred_region
      _
    $region57: #{sematic_proposal_attention.1} parent=1 // pred_fallthru
      _
    // Predicated region
    $region58: #{sematic_proposal_attention.1} parent=1 // pred_check
      _
    $region59: #{sematic_proposal_attention.1} parent=1 // pred_check_branch
      %52 = sbr.rel (0) target = $region61
    $region60: #{sematic_proposal_attention.1} parent=1 // pred_region
      _
    $region61: #{sematic_proposal_attention.1} parent=1 // pred_fallthru
      _
    %v54 = vld [vmem:[%s0] sm:$0xff]
    %v55 = vpack.c.bf16 %v54, %v54
    %v56 = vld [vmem:[%s4] sm:$0xf]
    %v57 = vld [vmem:[%s4 + $0x4] sm:$0xf]
    %v58 = vld [vmem:[%s4 + $0x8] sm:$0xf]
    %v59 = vld [vmem:[%s4 + $0xc] sm:$0xf]
    %v60 = vld [vmem:[%s4 + $0x10] sm:$0xf]
    %v61 = vld [vmem:[%s4 + $0x14] sm:$0xf]
    %v62 = vld [vmem:[%s4 + $0x18] sm:$0xf]
    %v63 = vld [vmem:[%s4 + $0x1c] sm:$0xf]
    %v64 = vld [vmem:[%s4 + $0x20] sm:$0xf]
    %v65 = vld [vmem:[%s4 + $0x24] sm:$0xf]
    %v66 = vld [vmem:[%s4 + $0x28] sm:$0xf]
    %v67 = vld [vmem:[%s4 + $0x2c] sm:$0xf]
    %v68 = vld [vmem:[%s4 + $0x30] sm:$0xf]
    %v69 = vld [vmem:[%s4 + $0x34] sm:$0xf]
    %v70 = vld [vmem:[%s4 + $0x38] sm:$0xf]
    %v71 = vld [vmem:[%s4 + $0x3c] sm:$0xf]
    %v88 = vunpack.c.l.b16 %v56
    %v89 = vunpack.c.l.b16 %v57
    %v90 = vunpack.c.l.b16 %v58
    %v91 = vunpack.c.l.b16 %v59
    %v92 = vunpack.c.l.b16 %v60
    %v93 = vunpack.c.l.b16 %v61
    %v94 = vunpack.c.l.b16 %v62
    %v95 = vunpack.c.l.b16 %v63
    %v96 = vunpack.c.l.b16 %v64
    %v97 = vunpack.c.l.b16 %v65
    %v98 = vunpack.c.l.b16 %v66
    %v99 = vunpack.c.l.b16 %v67
    %v100 = vunpack.c.l.b16 %v68
    %v101 = vunpack.c.l.b16 %v69
    %v102 = vunpack.c.l.b16 %v70
    %v103 = vunpack.c.l.b16 %v71
    %v104 = vpack.c.b16 %v89, %v88
    %v105 = vpack.c.b16 %v91, %v90
    %v106 = vpack.c.b16 %v93, %v92
    %v107 = vpack.c.b16 %v95, %v94
    %v108 = vpack.c.b16 %v97, %v96
    %v109 = vpack.c.b16 %v99, %v98
    %v110 = vpack.c.b16 %v101, %v100
    %v111 = vpack.c.b16 %v103, %v102
    %120 = vmatprep.subr.bf16.mxu0 0
    %121 = vmatpush1.bf16.msra.mxu0 %v111
    %122 = vmatprep.subr.bf16.mxu0 0
    %123 = vmatpush1.bf16.msra.mxu0 %v110
    %124 = vmatprep.subr.bf16.mxu0 0
    %125 = vmatpush1.bf16.msra.mxu0 %v109
    %126 = vmatprep.subr.bf16.mxu0 0
    %127 = vmatpush1.bf16.msra.mxu0 %v108
    %128 = vmatprep.subr.bf16.mxu0 0
    %129 = vmatpush1.bf16.msra.mxu0 %v107
    %130 = vmatprep.subr.bf16.mxu0 0
    %131 = vmatpush1.bf16.msra.mxu0 %v106
    %132 = vmatprep.subr.bf16.mxu0 0
    %133 = vmatpush1.bf16.msra.mxu0 %v105
    %134 = vmatprep.subr.bf16.mxu0 0
    %135 = vmatpush1.bf16.msra.mxu0 %v104
    %136 = vmatprep.subr.bf16.mxu0 0
    %137 = vmatpush2.bf16.msra.mxu0 0
    %138 = vmatprep.subr.bf16.mxu0 0
    %139 = vmatpush2.bf16.msra.mxu0 0
    %140 = vmatprep.subr.bf16.mxu0 0
    %141 = vmatpush2.bf16.msra.mxu0 0
    %142 = vmatprep.subr.bf16.mxu0 0
    %143 = vmatpush2.bf16.msra.mxu0 0
    %144 = vmatprep.subr.bf16.mxu0 0
    %145 = vmatpush2.bf16.msra.mxu0 0
    %146 = vmatprep.subr.bf16.mxu0 0
    %147 = vmatpush2.bf16.msra.mxu0 0
    %148 = vmatprep.subr.bf16.mxu0 0
    %149 = vmatpush2.bf16.msra.mxu0 0
    %150 = vmatprep.subr.bf16.mxu0 0
    %151 = vmatpush2.bf16.msra.mxu0 0
    %152 = vmatprep.mubr.bf16.mxu0 0
    %153 = vmatmul.mubr.bf16.gmra.mxu0 %v55
    %v154 = vpop.f32.mrf.mxu0
    %v155 = vadd.f32 0.0, %v154
    %v156 = vpop.f32.mrf.mxu0
    %v157 = vpop.f32.mrf.mxu0
    %v158 = vpop.f32.mrf.mxu0
    %159 = vdwg.mxu0
    %v160 = vpack.c.bf16 %v155, %v155
    %v161 = vld [vmem:[%s1] sm:$0xf]
    %v162 = vld [vmem:[%s1 + $0x4] sm:$0xf]
    %v163 = vld [vmem:[%s1 + $0x8] sm:$0xf]
    %v164 = vld [vmem:[%s1 + $0xc] sm:$0xf]
    %v165 = vld [vmem:[%s1 + $0x10] sm:$0xf]
    %v166 = vld [vmem:[%s1 + $0x14] sm:$0xf]
    %v167 = vld [vmem:[%s1 + $0x18] sm:$0xf]
    %v168 = vld [vmem:[%s1 + $0x1c] sm:$0xf]
    %v169 = vld [vmem:[%s1 + $0x20] sm:$0xf]
    %v170 = vld [vmem:[%s1 + $0x24] sm:$0xf]
    %v171 = vld [vmem:[%s1 + $0x28] sm:$0xf]
    %v172 = vld [vmem:[%s1 + $0x2c] sm:$0xf]
    %v173 = vld [vmem:[%s1 + $0x30] sm:$0xf]
    %v174 = vld [vmem:[%s1 + $0x34] sm:$0xf]
    %v175 = vld [vmem:[%s1 + $0x38] sm:$0xf]
    %v176 = vld [vmem:[%s1 + $0x3c] sm:$0xf]
    %v177 = vld [vmem:[%s3] sm:$0x1]
    %v179 = vlaneseq
    %v180 = vshrl.u32 %v179, 7
    %v181 = vsub.s32 0, %v180
    %v182 = vrot.slane %v177, %v181
    %v200 = vunpack.c.l.b16 %v161
    %v201 = vunpack.c.l.b16 %v162
    %v202 = vunpack.c.l.b16 %v163
    %v203 = vunpack.c.l.b16 %v164
    %v204 = vunpack.c.l.b16 %v165
    %v205 = vunpack.c.l.b16 %v166
    %v206 = vunpack.c.l.b16 %v167
    %v207 = vunpack.c.l.b16 %v168
    %v208 = vunpack.c.l.b16 %v169
    %v209 = vunpack.c.l.b16 %v170
    %v210 = vunpack.c.l.b16 %v171
    %v211 = vunpack.c.l.b16 %v172
    %v212 = vunpack.c.l.b16 %v173
    %v213 = vunpack.c.l.b16 %v174
    %v214 = vunpack.c.l.b16 %v175
    %v215 = vunpack.c.l.b16 %v176
    %v216 = vpack.c.b16 %v201, %v200
    %v217 = vpack.c.b16 %v203, %v202
    %v218 = vpack.c.b16 %v205, %v204
    %v219 = vpack.c.b16 %v207, %v206
    %v220 = vpack.c.b16 %v209, %v208
    %v221 = vpack.c.b16 %v211, %v210
    %v222 = vpack.c.b16 %v213, %v212
    %v223 = vpack.c.b16 %v215, %v214
    %232 = vmatprep.subr.bf16.mxu0 0
    %233 = vmatpush1.bf16.msra.mxu0 %v223
    %234 = vmatprep.subr.bf16.mxu0 0
    %235 = vmatpush1.bf16.msra.mxu0 %v222
    %236 = vmatprep.subr.bf16.mxu0 0
    %237 = vmatpush1.bf16.msra.mxu0 %v221
    %238 = vmatprep.subr.bf16.mxu0 0
    %239 = vmatpush1.bf16.msra.mxu0 %v220
    %240 = vmatprep.subr.bf16.mxu0 0
    %241 = vmatpush1.bf16.msra.mxu0 %v219
    %242 = vmatprep.subr.bf16.mxu0 0
    %243 = vmatpush1.bf16.msra.mxu0 %v218
    %244 = vmatprep.subr.bf16.mxu0 0
    %245 = vmatpush1.bf16.msra.mxu0 %v217
    %246 = vmatprep.subr.bf16.mxu0 0
    %247 = vmatpush1.bf16.msra.mxu0 %v216
    %248 = vmatprep.subr.bf16.mxu0 0
    %249 = vmatpush2.bf16.msra.mxu0 0
    %250 = vmatprep.subr.bf16.mxu0 0
    %251 = vmatpush2.bf16.msra.mxu0 0
    %252 = vmatprep.subr.bf16.mxu0 0
    %253 = vmatpush2.bf16.msra.mxu0 0
    %254 = vmatprep.subr.bf16.mxu0 0
    %255 = vmatpush2.bf16.msra.mxu0 0
    %256 = vmatprep.subr.bf16.mxu0 0
    %257 = vmatpush2.bf16.msra.mxu0 0
    %258 = vmatprep.subr.bf16.mxu0 0
    %259 = vmatpush2.bf16.msra.mxu0 0
    %260 = vmatprep.subr.bf16.mxu0 0
    %261 = vmatpush2.bf16.msra.mxu0 0
    %262 = vmatprep.subr.bf16.mxu0 0
    %263 = vmatpush2.bf16.msra.mxu0 0
    %264 = vmatprep.mubr.bf16.mxu0 0
    %265 = vmatmul.mubr.bf16.gmra.mxu0 %v160
    %v266 = vpop.f32.mrf.mxu0
    %v267 = vadd.f32 %v182, %v266
    %v268 = vpop.f32.mrf.mxu0
    %v269 = vpop.f32.mrf.mxu0
    %v270 = vpop.f32.mrf.mxu0
    %271 = vdwg.mxu0
    %272 = vmax.xlane.f32.xlu0 %v267
    %v273 = vpop.xlane.xlu0 %272
    %v274 = vsub.f32 %v267, %v273
    %v275 = vmul.f32 %v274, 1.442695
    %v276 = vpow.pop %v275
    %277 = vadd.xlane.f32.xlu0 %v276
    %v278 = vpop.xlane.xlu0 %277
    %v279 = vrcp.pop %v278
    %v280 = vmul.f32 %v276, %v279
    %v281 = vpack.c.bf16 %v280, %v280
    %282 = vst [vmem:[%s16] sm:$0xf] %v281
    %v283 = vld [vmem:[%s2] sm:$0xf]
    %v284 = vld [vmem:[%s2 + $0x4] sm:$0xf]
    %v285 = vld [vmem:[%s2 + $0x8] sm:$0xf]
    %v286 = vld [vmem:[%s2 + $0xc] sm:$0xf]
    %v287 = vld [vmem:[%s2 + $0x10] sm:$0xf]
    %v288 = vld [vmem:[%s2 + $0x14] sm:$0xf]
    %v289 = vld [vmem:[%s2 + $0x18] sm:$0xf]
    %v290 = vld [vmem:[%s2 + $0x1c] sm:$0xf]
    %v291 = vld [vmem:[%s2 + $0x20] sm:$0xf]
    %v292 = vld [vmem:[%s2 + $0x24] sm:$0xf]
    %v293 = vld [vmem:[%s2 + $0x28] sm:$0xf]
    %v294 = vld [vmem:[%s2 + $0x2c] sm:$0xf]
    %v295 = vld [vmem:[%s2 + $0x30] sm:$0xf]
    %v296 = vld [vmem:[%s2 + $0x34] sm:$0xf]
    %v297 = vld [vmem:[%s2 + $0x38] sm:$0xf]
    %v298 = vld [vmem:[%s2 + $0x3c] sm:$0xf]
    %v315 = vunpack.c.l.b16 %v283
    %v316 = vunpack.c.l.b16 %v284
    %v317 = vunpack.c.l.b16 %v285
    %v318 = vunpack.c.l.b16 %v286
    %v319 = vunpack.c.l.b16 %v287
    %v320 = vunpack.c.l.b16 %v288
    %v321 = vunpack.c.l.b16 %v289
    %v322 = vunpack.c.l.b16 %v290
    %v323 = vunpack.c.l.b16 %v291
    %v324 = vunpack.c.l.b16 %v292
    %v325 = vunpack.c.l.b16 %v293
    %v326 = vunpack.c.l.b16 %v294
    %v327 = vunpack.c.l.b16 %v295
    %v328 = vunpack.c.l.b16 %v296
    %v329 = vunpack.c.l.b16 %v297
    %v330 = vunpack.c.l.b16 %v298
    %v331 = vpack.c.b16 %v316, %v315
    %v332 = vpack.c.b16 %v318, %v317
    %v333 = vpack.c.b16 %v320, %v319
    %v334 = vpack.c.b16 %v322, %v321
    %v335 = vpack.c.b16 %v324, %v323
    %v336 = vpack.c.b16 %v326, %v325
    %v337 = vpack.c.b16 %v328, %v327
    %v338 = vpack.c.b16 %v330, %v329
    %347 = vmatprep.subr.bf16.mxu0 0
    %348 = vmatpush1.bf16.msra.mxu0 %v338
    %349 = vmatprep.subr.bf16.mxu0 0
    %350 = vmatpush1.bf16.msra.mxu0 %v337
    %351 = vmatprep.subr.bf16.mxu0 0
    %352 = vmatpush1.bf16.msra.mxu0 %v336
    %353 = vmatprep.subr.bf16.mxu0 0
    %354 = vmatpush1.bf16.msra.mxu0 %v335
    %355 = vmatprep.subr.bf16.mxu0 0
    %356 = vmatpush1.bf16.msra.mxu0 %v334
    %357 = vmatprep.subr.bf16.mxu0 0
    %358 = vmatpush1.bf16.msra.mxu0 %v333
    %359 = vmatprep.subr.bf16.mxu0 0
    %360 = vmatpush1.bf16.msra.mxu0 %v332
    %361 = vmatprep.subr.bf16.mxu0 0
    %362 = vmatpush1.bf16.msra.mxu0 %v331
    %363 = vmatprep.subr.bf16.mxu0 0
    %364 = vmatpush2.bf16.msra.mxu0 0
    %365 = vmatprep.subr.bf16.mxu0 0
    %366 = vmatpush2.bf16.msra.mxu0 0
    %367 = vmatprep.subr.bf16.mxu0 0
    %368 = vmatpush2.bf16.msra.mxu0 0
    %369 = vmatprep.subr.bf16.mxu0 0
    %370 = vmatpush2.bf16.msra.mxu0 0
    %371 = vmatprep.subr.bf16.mxu0 0
    %372 = vmatpush2.bf16.msra.mxu0 0
    %373 = vmatprep.subr.bf16.mxu0 0
    %374 = vmatpush2.bf16.msra.mxu0 0
    %375 = vmatprep.subr.bf16.mxu0 0
    %376 = vmatpush2.bf16.msra.mxu0 0
    %377 = vmatprep.subr.bf16.mxu0 0
    %378 = vmatpush2.bf16.msra.mxu0 0
    %379 = vmatprep.mubr.bf16.mxu0 0
    %380 = vmatmul.mubr.bf16.gmra.mxu0 %v281
    %v381 = vpop.f32.mrf.mxu0
    %v382 = vadd.f32 0.0, %v381
    %v383 = vpop.f32.mrf.mxu0
    %v384 = vpop.f32.mrf.mxu0
    %v385 = vpop.f32.mrf.mxu0
    %386 = vdwg.mxu0
    %v387 = vmul.f32 %v382, %v54
    %v388 = vpack.c.bf16 %v387, %v387
    %v389 = vsub.f32 %v54, %v382
    %v390 = vpack.c.bf16 %v389, %v389
    %v391 = vld [vmem:[%s5] sm:$0xf]
    %v392 = vld [vmem:[%s5 + $0x4] sm:$0xf]
    %v393 = vld [vmem:[%s5 + $0x8] sm:$0xf]
    %v394 = vld [vmem:[%s5 + $0xc] sm:$0xf]
    %v395 = vld [vmem:[%s5 + $0x10] sm:$0xf]
    %v396 = vld [vmem:[%s5 + $0x14] sm:$0xf]
    %v397 = vld [vmem:[%s5 + $0x18] sm:$0xf]
    %v398 = vld [vmem:[%s5 + $0x1c] sm:$0xf]
    %v399 = vld [vmem:[%s5 + $0x20] sm:$0xf]
    %v400 = vld [vmem:[%s5 + $0x24] sm:$0xf]
    %v401 = vld [vmem:[%s5 + $0x28] sm:$0xf]
    %v402 = vld [vmem:[%s5 + $0x2c] sm:$0xf]
    %v403 = vld [vmem:[%s5 + $0x30] sm:$0xf]
    %v404 = vld [vmem:[%s5 + $0x34] sm:$0xf]
    %v405 = vld [vmem:[%s5 + $0x38] sm:$0xf]
    %v406 = vld [vmem:[%s5 + $0x3c] sm:$0xf]
    %v407 = vld [vmem:[%s5 + $0x40] sm:$0xf]
    %v408 = vld [vmem:[%s5 + $0x44] sm:$0xf]
    %v409 = vld [vmem:[%s5 + $0x48] sm:$0xf]
    %v410 = vld [vmem:[%s5 + $0x4c] sm:$0xf]
    %v411 = vld [vmem:[%s5 + $0x50] sm:$0xf]
    %v412 = vld [vmem:[%s5 + $0x54] sm:$0xf]
    %v413 = vld [vmem:[%s5 + $0x58] sm:$0xf]
    %v414 = vld [vmem:[%s5 + $0x5c] sm:$0xf]
    %v415 = vld [vmem:[%s5 + $0x60] sm:$0xf]
    %v416 = vld [vmem:[%s5 + $0x64] sm:$0xf]
    %v417 = vld [vmem:[%s5 + $0x68] sm:$0xf]
    %v418 = vld [vmem:[%s5 + $0x6c] sm:$0xf]
    %v419 = vld [vmem:[%s5 + $0x70] sm:$0xf]
    %v420 = vld [vmem:[%s5 + $0x74] sm:$0xf]
    %v421 = vld [vmem:[%s5 + $0x78] sm:$0xf]
    %v422 = vld [vmem:[%s5 + $0x7c] sm:$0xf]
    %v423 = vld [vmem:[%s6] sm:$0x1]
    %v425 = vlaneseq
    %v426 = vshrl.u32 %v425, 7
    %v427 = vsub.s32 0, %v426
    %v428 = vrot.slane %v423, %v427
    %v462 = vunpack.c.l.b16 %v391
    %v463 = vunpack.c.l.b16 %v392
    %v464 = vunpack.c.l.b16 %v393
    %v465 = vunpack.c.l.b16 %v394
    %v466 = vunpack.c.l.b16 %v395
    %v467 = vunpack.c.l.b16 %v396
    %v468 = vunpack.c.l.b16 %v397
    %v469 = vunpack.c.l.b16 %v398
    %v470 = vunpack.c.l.b16 %v399
    %v471 = vunpack.c.l.b16 %v400
    %v472 = vunpack.c.l.b16 %v401
    %v473 = vunpack.c.l.b16 %v402
    %v474 = vunpack.c.l.b16 %v403
    %v475 = vunpack.c.l.b16 %v404
    %v476 = vunpack.c.l.b16 %v405
    %v477 = vunpack.c.l.b16 %v406
    %v478 = vunpack.c.l.b16 %v407
    %v479 = vunpack.c.l.b16 %v408
    %v480 = vunpack.c.l.b16 %v409
    %v481 = vunpack.c.l.b16 %v410
    %v482 = vunpack.c.l.b16 %v411
    %v483 = vunpack.c.l.b16 %v412
    %v484 = vunpack.c.l.b16 %v413
    %v485 = vunpack.c.l.b16 %v414
    %v486 = vunpack.c.l.b16 %v415
    %v487 = vunpack.c.l.b16 %v416
    %v488 = vunpack.c.l.b16 %v417
    %v489 = vunpack.c.l.b16 %v418
    %v490 = vunpack.c.l.b16 %v419
    %v491 = vunpack.c.l.b16 %v420
    %v492 = vunpack.c.l.b16 %v421
    %v493 = vunpack.c.l.b16 %v422
    %v494 = vpack.c.b16 %v463, %v462
    %v495 = vpack.c.b16 %v465, %v464
    %v496 = vpack.c.b16 %v467, %v466
    %v497 = vpack.c.b16 %v469, %v468
    %v498 = vpack.c.b16 %v471, %v470
    %v499 = vpack.c.b16 %v473, %v472
    %v500 = vpack.c.b16 %v475, %v474
    %v501 = vpack.c.b16 %v477, %v476
    %v502 = vpack.c.b16 %v479, %v478
    %v503 = vpack.c.b16 %v481, %v480
    %v504 = vpack.c.b16 %v483, %v482
    %v505 = vpack.c.b16 %v485, %v484
    %v506 = vpack.c.b16 %v487, %v486
    %v507 = vpack.c.b16 %v489, %v488
    %v508 = vpack.c.b16 %v491, %v490
    %v509 = vpack.c.b16 %v493, %v492
    %526 = vmatprep.subr.bf16.mxu0 0
    %527 = vmatpush1.bf16.msra.mxu0 %v501
    %528 = vmatprep.subr.bf16.mxu0 0
    %529 = vmatpush1.bf16.msra.mxu0 %v500
    %530 = vmatprep.subr.bf16.mxu0 0
    %531 = vmatpush1.bf16.msra.mxu0 %v499
    %532 = vmatprep.subr.bf16.mxu0 0
    %533 = vmatpush1.bf16.msra.mxu0 %v498
    %534 = vmatprep.subr.bf16.mxu0 0
    %535 = vmatpush1.bf16.msra.mxu0 %v497
    %536 = vmatprep.subr.bf16.mxu0 0
    %537 = vmatpush1.bf16.msra.mxu0 %v496
    %538 = vmatprep.subr.bf16.mxu0 0
    %539 = vmatpush1.bf16.msra.mxu0 %v495
    %540 = vmatprep.subr.bf16.mxu0 0
    %541 = vmatpush1.bf16.msra.mxu0 %v494
    %542 = vmatprep.subr.bf16.mxu0 0
    %543 = vmatpush2.bf16.msra.mxu0 %v509
    %544 = vmatprep.subr.bf16.mxu0 0
    %545 = vmatpush2.bf16.msra.mxu0 %v508
    %546 = vmatprep.subr.bf16.mxu0 0
    %547 = vmatpush2.bf16.msra.mxu0 %v507
    %548 = vmatprep.subr.bf16.mxu0 0
    %549 = vmatpush2.bf16.msra.mxu0 %v506
    %550 = vmatprep.subr.bf16.mxu0 0
    %551 = vmatpush2.bf16.msra.mxu0 %v505
    %552 = vmatprep.subr.bf16.mxu0 0
    %553 = vmatpush2.bf16.msra.mxu0 %v504
    %554 = vmatprep.subr.bf16.mxu0 0
    %555 = vmatpush2.bf16.msra.mxu0 %v503
    %556 = vmatprep.subr.bf16.mxu0 0
    %557 = vmatpush2.bf16.msra.mxu0 %v502
    %558 = vmatprep.mubr.bf16.mxu0 %v390
    %559 = vmatmul.mubr.bf16.gmra.mxu0 %v388
    %v560 = vpop.f32.mrf.mxu0
    %v561 = vadd.f32 %v428, %v560
    %v562 = vpop.f32.mrf.mxu0
    %v563 = vpop.f32.mrf.mxu0
    %v564 = vpop.f32.mrf.mxu0
    %565 = vdwg.mxu0
    %v566 = vmax.f32 %v561, 0.0
    %v567 = vpack.c.bf16 %v566, %v566
    %v568 = vld [vmem:[%s7] sm:$0xf]
    %v569 = vld [vmem:[%s7 + $0x4] sm:$0xf]
    %v570 = vld [vmem:[%s7 + $0x8] sm:$0xf]
    %v571 = vld [vmem:[%s7 + $0xc] sm:$0xf]
    %v572 = vld [vmem:[%s7 + $0x10] sm:$0xf]
    %v573 = vld [vmem:[%s7 + $0x14] sm:$0xf]
    %v574 = vld [vmem:[%s7 + $0x18] sm:$0xf]
    %v575 = vld [vmem:[%s7 + $0x1c] sm:$0xf]
    %v576 = vld [vmem:[%s7 + $0x20] sm:$0xf]
    %v577 = vld [vmem:[%s7 + $0x24] sm:$0xf]
    %v578 = vld [vmem:[%s7 + $0x28] sm:$0xf]
    %v579 = vld [vmem:[%s7 + $0x2c] sm:$0xf]
    %v580 = vld [vmem:[%s7 + $0x30] sm:$0xf]
    %v581 = vld [vmem:[%s7 + $0x34] sm:$0xf]
    %v582 = vld [vmem:[%s7 + $0x38] sm:$0xf]
    %v583 = vld [vmem:[%s7 + $0x3c] sm:$0xf]
    %v584 = vld [vmem:[%s7 + $0x40] sm:$0xf]
    %v585 = vld [vmem:[%s7 + $0x44] sm:$0xf]
    %v586 = vld [vmem:[%s7 + $0x48] sm:$0xf]
    %v587 = vld [vmem:[%s7 + $0x4c] sm:$0xf]
    %v588 = vld [vmem:[%s7 + $0x50] sm:$0xf]
    %v589 = vld [vmem:[%s7 + $0x54] sm:$0xf]
    %v590 = vld [vmem:[%s7 + $0x58] sm:$0xf]
    %v591 = vld [vmem:[%s7 + $0x5c] sm:$0xf]
    %v592 = vld [vmem:[%s7 + $0x60] sm:$0xf]
    %v593 = vld [vmem:[%s7 + $0x64] sm:$0xf]
    %v594 = vld [vmem:[%s7 + $0x68] sm:$0xf]
    %v595 = vld [vmem:[%s7 + $0x6c] sm:$0xf]
    %v596 = vld [vmem:[%s7 + $0x70] sm:$0xf]
    %v597 = vld [vmem:[%s7 + $0x74] sm:$0xf]
    %v598 = vld [vmem:[%s7 + $0x78] sm:$0xf]
    %v599 = vld [vmem:[%s7 + $0x7c] sm:$0xf]
    %v600 = vld [vmem:[%s8] sm:$0x1]
    %v602 = vlaneseq
    %v603 = vshrl.u32 %v602, 7
    %v604 = vsub.s32 0, %v603
    %v605 = vrot.slane %v600, %v604
    %v639 = vunpack.c.l.b16 %v568
    %v640 = vunpack.c.l.b16 %v569
    %v641 = vunpack.c.l.b16 %v570
    %v642 = vunpack.c.l.b16 %v571
    %v643 = vunpack.c.l.b16 %v572
    %v644 = vunpack.c.l.b16 %v573
    %v645 = vunpack.c.l.b16 %v574
    %v646 = vunpack.c.l.b16 %v575
    %v647 = vunpack.c.l.b16 %v576
    %v648 = vunpack.c.l.b16 %v577
    %v649 = vunpack.c.l.b16 %v578
    %v650 = vunpack.c.l.b16 %v579
    %v651 = vunpack.c.l.b16 %v580
    %v652 = vunpack.c.l.b16 %v581
    %v653 = vunpack.c.l.b16 %v582
    %v654 = vunpack.c.l.b16 %v583
    %v655 = vunpack.c.l.b16 %v584
    %v656 = vunpack.c.l.b16 %v585
    %v657 = vunpack.c.l.b16 %v586
    %v658 = vunpack.c.l.b16 %v587
    %v659 = vunpack.c.l.b16 %v588
    %v660 = vunpack.c.l.b16 %v589
    %v661 = vunpack.c.l.b16 %v590
    %v662 = vunpack.c.l.b16 %v591
    %v663 = vunpack.c.l.b16 %v592
    %v664 = vunpack.c.l.b16 %v593
    %v665 = vunpack.c.l.b16 %v594
    %v666 = vunpack.c.l.b16 %v595
    %v667 = vunpack.c.l.b16 %v596
    %v668 = vunpack.c.l.b16 %v597
    %v669 = vunpack.c.l.b16 %v598
    %v670 = vunpack.c.l.b16 %v599
    %v671 = vpack.c.b16 %v640, %v639
    %v672 = vpack.c.b16 %v642, %v641
    %v673 = vpack.c.b16 %v644, %v643
    %v674 = vpack.c.b16 %v646, %v645
    %v675 = vpack.c.b16 %v648, %v647
    %v676 = vpack.c.b16 %v650, %v649
    %v677 = vpack.c.b16 %v652, %v651
    %v678 = vpack.c.b16 %v654, %v653
    %v679 = vpack.c.b16 %v656, %v655
    %v680 = vpack.c.b16 %v658, %v657
    %v681 = vpack.c.b16 %v660, %v659
    %v682 = vpack.c.b16 %v662, %v661
    %v683 = vpack.c.b16 %v664, %v663
    %v684 = vpack.c.b16 %v666, %v665
    %v685 = vpack.c.b16 %v668, %v667
    %v686 = vpack.c.b16 %v670, %v669
    %703 = vmatprep.subr.bf16.mxu0 0
    %704 = vmatpush1.bf16.msra.mxu0 %v678
    %705 = vmatprep.subr.bf16.mxu0 0
    %706 = vmatpush1.bf16.msra.mxu0 %v677
    %707 = vmatprep.subr.bf16.mxu0 0
    %708 = vmatpush1.bf16.msra.mxu0 %v676
    %709 = vmatprep.subr.bf16.mxu0 0
    %710 = vmatpush1.bf16.msra.mxu0 %v675
    %711 = vmatprep.subr.bf16.mxu0 0
    %712 = vmatpush1.bf16.msra.mxu0 %v674
    %713 = vmatprep.subr.bf16.mxu0 0
    %714 = vmatpush1.bf16.msra.mxu0 %v673
    %715 = vmatprep.subr.bf16.mxu0 0
    %716 = vmatpush1.bf16.msra.mxu0 %v672
    %717 = vmatprep.subr.bf16.mxu0 0
    %718 = vmatpush1.bf16.msra.mxu0 %v671
    %719 = vmatprep.subr.bf16.mxu0 0
    %720 = vmatpush2.bf16.msra.mxu0 %v686
    %721 = vmatprep.subr.bf16.mxu0 0
    %722 = vmatpush2.bf16.msra.mxu0 %v685
    %723 = vmatprep.subr.bf16.mxu0 0
    %724 = vmatpush2.bf16.msra.mxu0 %v684
    %725 = vmatprep.subr.bf16.mxu0 0
    %726 = vmatpush2.bf16.msra.mxu0 %v683
    %727 = vmatprep.subr.bf16.mxu0 0
    %728 = vmatpush2.bf16.msra.mxu0 %v682
    %729 = vmatprep.subr.bf16.mxu0 0
    %730 = vmatpush2.bf16.msra.mxu0 %v681
    %731 = vmatprep.subr.bf16.mxu0 0
    %732 = vmatpush2.bf16.msra.mxu0 %v680
    %733 = vmatprep.subr.bf16.mxu0 0
    %734 = vmatpush2.bf16.msra.mxu0 %v679
    %735 = vmatprep.mubr.bf16.mxu0 %v55
    %736 = vmatmul.mubr.bf16.gmra.mxu0 %v567
    %v737 = vpop.f32.mrf.mxu0
    %v738 = vadd.f32 %v605, %v737
    %v739 = vpop.f32.mrf.mxu0
    %v740 = vpop.f32.mrf.mxu0
    %v741 = vpop.f32.mrf.mxu0
    %742 = vdwg.mxu0
    %v743 = vpack.c.bf16 %v738, %v738
    %v744 = vld [vmem:[%s9] sm:$0xff]
    %v745 = vld [vmem:[%s9 + $0x8] sm:$0xff]
    %v746 = vld [vmem:[%s9 + $0x10] sm:$0xff]
    %v747 = vld [vmem:[%s9 + $0x18] sm:$0xff]
    %v748 = vld [vmem:[%s9 + $0x20] sm:$0xff]
    %v749 = vld [vmem:[%s9 + $0x28] sm:$0xff]
    %v750 = vld [vmem:[%s9 + $0x30] sm:$0xff]
    %v751 = vld [vmem:[%s9 + $0x38] sm:$0xff]
    %v752 = vld [vmem:[%s9 + $0x40] sm:$0xff]
    %v753 = vld [vmem:[%s9 + $0x48] sm:$0xff]
    %v754 = vld [vmem:[%s9 + $0x50] sm:$0xff]
    %v755 = vld [vmem:[%s9 + $0x58] sm:$0xff]
    %v756 = vld [vmem:[%s9 + $0x60] sm:$0xff]
    %v757 = vld [vmem:[%s9 + $0x68] sm:$0xff]
    %v758 = vld [vmem:[%s9 + $0x70] sm:$0xff]
    %v759 = vld [vmem:[%s9 + $0x78] sm:$0xff]
    %v760 = vld [vmem:[%s9 + $0x80] sm:$0xff]
    %v761 = vld [vmem:[%s9 + $0x88] sm:$0xff]
    %v762 = vld [vmem:[%s9 + $0x90] sm:$0xff]
    %v763 = vld [vmem:[%s9 + $0x98] sm:$0xff]
    %v764 = vld [vmem:[%s9 + $0xa0] sm:$0xff]
    %v765 = vld [vmem:[%s9 + $0xa8] sm:$0xff]
    %v766 = vld [vmem:[%s9 + $0xb0] sm:$0xff]
    %v767 = vld [vmem:[%s9 + $0xb8] sm:$0xff]
    %v768 = vld [vmem:[%s9 + $0xc0] sm:$0xff]
    %v769 = vld [vmem:[%s9 + $0xc8] sm:$0xff]
    %v770 = vld [vmem:[%s9 + $0xd0] sm:$0xff]
    %v771 = vld [vmem:[%s9 + $0xd8] sm:$0xff]
    %v772 = vld [vmem:[%s9 + $0xe0] sm:$0xff]
    %v773 = vld [vmem:[%s9 + $0xe8] sm:$0xff]
    %v774 = vld [vmem:[%s9 + $0xf0] sm:$0xff]
    %v775 = vld [vmem:[%s9 + $0xf8] sm:$0xff]
    %v776 = vld [vmem:[%s9 + $0x100] sm:$0xff]
    %v777 = vld [vmem:[%s9 + $0x108] sm:$0xff]
    %v778 = vld [vmem:[%s9 + $0x110] sm:$0xff]
    %v779 = vld [vmem:[%s9 + $0x118] sm:$0xff]
    %v780 = vld [vmem:[%s9 + $0x120] sm:$0xff]
    %v781 = vld [vmem:[%s9 + $0x128] sm:$0xff]
    %v782 = vld [vmem:[%s9 + $0x130] sm:$0xff]
    %v783 = vld [vmem:[%s9 + $0x138] sm:$0xff]
    %v784 = vld [vmem:[%s9 + $0x140] sm:$0xff]
    %v785 = vld [vmem:[%s9 + $0x148] sm:$0xff]
    %v786 = vld [vmem:[%s9 + $0x150] sm:$0xff]
    %v787 = vld [vmem:[%s9 + $0x158] sm:$0xff]
    %v788 = vld [vmem:[%s9 + $0x160] sm:$0xff]
    %v789 = vld [vmem:[%s9 + $0x168] sm:$0xff]
    %v790 = vld [vmem:[%s9 + $0x170] sm:$0xff]
    %v791 = vld [vmem:[%s9 + $0x178] sm:$0xff]
    %v792 = vld [vmem:[%s9 + $0x180] sm:$0xff]
    %v793 = vld [vmem:[%s9 + $0x188] sm:$0xff]
    %v794 = vld [vmem:[%s9 + $0x190] sm:$0xff]
    %v795 = vld [vmem:[%s9 + $0x198] sm:$0xff]
    %v796 = vld [vmem:[%s9 + $0x1a0] sm:$0xff]
    %v797 = vld [vmem:[%s9 + $0x1a8] sm:$0xff]
    %v798 = vld [vmem:[%s9 + $0x1b0] sm:$0xff]
    %v799 = vld [vmem:[%s9 + $0x1b8] sm:$0xff]
    %v800 = vld [vmem:[%s9 + $0x1c0] sm:$0xff]
    %v801 = vld [vmem:[%s9 + $0x1c8] sm:$0xff]
    %v802 = vld [vmem:[%s9 + $0x1d0] sm:$0xff]
    %v803 = vld [vmem:[%s9 + $0x1d8] sm:$0xff]
    %v804 = vld [vmem:[%s9 + $0x1e0] sm:$0xff]
    %v805 = vld [vmem:[%s9 + $0x1e8] sm:$0xff]
    %v806 = vld [vmem:[%s9 + $0x1f0] sm:$0xff]
    %v807 = vld [vmem:[%s9 + $0x1f8] sm:$0xff]
    %v808 = vld [vmem:[%s10] sm:$0xff]
    %v810 = vlaneseq
    %v811 = vshrl.u32 %v810, 7
    %v812 = vsub.s32 0, %v811
    %v813 = vrot.slane %v808, %v812
    %v814 = vlaneseq
    %v815 = vshrl.u32 %v814, 7
    %v816 = vsub.s32 1, %v815
    %v817 = vrot.slane %v808, %v816
    %v818 = vlaneseq
    %v819 = vshrl.u32 %v818, 7
    %v820 = vsub.s32 2, %v819
    %v821 = vrot.slane %v808, %v820
    %v822 = vlaneseq
    %v823 = vshrl.u32 %v822, 7
    %v824 = vsub.s32 3, %v823
    %v825 = vrot.slane %v808, %v824
    %v826 = vlaneseq
    %v827 = vshrl.u32 %v826, 7
    %v828 = vsub.s32 4, %v827
    %v829 = vrot.slane %v808, %v828
    %v830 = vlaneseq
    %v831 = vshrl.u32 %v830, 7
    %v832 = vsub.s32 5, %v831
    %v833 = vrot.slane %v808, %v832
    %v834 = vlaneseq
    %v835 = vshrl.u32 %v834, 7
    %v836 = vsub.s32 6, %v835
    %v837 = vrot.slane %v808, %v836
    %v838 = vlaneseq
    %v839 = vshrl.u32 %v838, 7
    %v840 = vsub.s32 7, %v839
    %v841 = vrot.slane %v808, %v840
    %v914 = vunpack.c.l.b16 %v744
    %v915 = vunpack.c.h.b16 %v744
    %v916 = vunpack.c.l.b16 %v745
    %v917 = vunpack.c.h.b16 %v745
    %v918 = vunpack.c.l.b16 %v746
    %v919 = vunpack.c.h.b16 %v746
    %v920 = vunpack.c.l.b16 %v747
    %v921 = vunpack.c.h.b16 %v747
    %v922 = vunpack.c.l.b16 %v748
    %v923 = vunpack.c.h.b16 %v748
    %v924 = vunpack.c.l.b16 %v749
    %v925 = vunpack.c.h.b16 %v749
    %v926 = vunpack.c.l.b16 %v750
    %v927 = vunpack.c.h.b16 %v750
    %v928 = vunpack.c.l.b16 %v751
    %v929 = vunpack.c.h.b16 %v751
    %v930 = vunpack.c.l.b16 %v752
    %v931 = vunpack.c.h.b16 %v752
    %v932 = vunpack.c.l.b16 %v753
    %v933 = vunpack.c.h.b16 %v753
    %v934 = vunpack.c.l.b16 %v754
    %v935 = vunpack.c.h.b16 %v754
    %v936 = vunpack.c.l.b16 %v755
    %v937 = vunpack.c.h.b16 %v755
    %v938 = vunpack.c.l.b16 %v756
    %v939 = vunpack.c.h.b16 %v756
    %v940 = vunpack.c.l.b16 %v757
    %v941 = vunpack.c.h.b16 %v757
    %v942 = vunpack.c.l.b16 %v758
    %v943 = vunpack.c.h.b16 %v758
    %v944 = vunpack.c.l.b16 %v759
    %v945 = vunpack.c.h.b16 %v759
    %v946 = vunpack.c.l.b16 %v760
    %v947 = vunpack.c.h.b16 %v760
    %v948 = vunpack.c.l.b16 %v761
    %v949 = vunpack.c.h.b16 %v761
    %v950 = vunpack.c.l.b16 %v762
    %v951 = vunpack.c.h.b16 %v762
    %v952 = vunpack.c.l.b16 %v763
    %v953 = vunpack.c.h.b16 %v763
    %v954 = vunpack.c.l.b16 %v764
    %v955 = vunpack.c.h.b16 %v764
    %v956 = vunpack.c.l.b16 %v765
    %v957 = vunpack.c.h.b16 %v765
    %v958 = vunpack.c.l.b16 %v766
    %v959 = vunpack.c.h.b16 %v766
    %v960 = vunpack.c.l.b16 %v767
    %v961 = vunpack.c.h.b16 %v767
    %v962 = vunpack.c.l.b16 %v768
    %v963 = vunpack.c.h.b16 %v768
    %v964 = vunpack.c.l.b16 %v769
    %v965 = vunpack.c.h.b16 %v769
    %v966 = vunpack.c.l.b16 %v770
    %v967 = vunpack.c.h.b16 %v770
    %v968 = vunpack.c.l.b16 %v771
    %v969 = vunpack.c.h.b16 %v771
    %v970 = vunpack.c.l.b16 %v772
    %v971 = vunpack.c.h.b16 %v772
    %v972 = vunpack.c.l.b16 %v773
    %v973 = vunpack.c.h.b16 %v773
    %v974 = vunpack.c.l.b16 %v774
    %v975 = vunpack.c.h.b16 %v774
    %v976 = vunpack.c.l.b16 %v775
    %v977 = vunpack.c.h.b16 %v775
    %v978 = vunpack.c.l.b16 %v776
    %v979 = vunpack.c.h.b16 %v776
    %v980 = vunpack.c.l.b16 %v777
    %v981 = vunpack.c.h.b16 %v777
    %v982 = vunpack.c.l.b16 %v778
    %v983 = vunpack.c.h.b16 %v778
    %v984 = vunpack.c.l.b16 %v779
    %v985 = vunpack.c.h.b16 %v779
    %v986 = vunpack.c.l.b16 %v780
    %v987 = vunpack.c.h.b16 %v780
    %v988 = vunpack.c.l.b16 %v781
    %v989 = vunpack.c.h.b16 %v781
    %v990 = vunpack.c.l.b16 %v782
    %v991 = vunpack.c.h.b16 %v782
    %v992 = vunpack.c.l.b16 %v783
    %v993 = vunpack.c.h.b16 %v783
    %v994 = vunpack.c.l.b16 %v784
    %v995 = vunpack.c.h.b16 %v784
    %v996 = vunpack.c.l.b16 %v785
    %v997 = vunpack.c.h.b16 %v785
    %v998 = vunpack.c.l.b16 %v786
    %v999 = vunpack.c.h.b16 %v786
    %v1000 = vunpack.c.l.b16 %v787
    %v1001 = vunpack.c.h.b16 %v787
    %v1002 = vunpack.c.l.b16 %v788
    %v1003 = vunpack.c.h.b16 %v788
    %v1004 = vunpack.c.l.b16 %v789
    %v1005 = vunpack.c.h.b16 %v789
    %v1006 = vunpack.c.l.b16 %v790
    %v1007 = vunpack.c.h.b16 %v790
    %v1008 = vunpack.c.l.b16 %v791
    %v1009 = vunpack.c.h.b16 %v791
    %v1010 = vunpack.c.l.b16 %v792
    %v1011 = vunpack.c.h.b16 %v792
    %v1012 = vunpack.c.l.b16 %v793
    %v1013 = vunpack.c.h.b16 %v793
    %v1014 = vunpack.c.l.b16 %v794
    %v1015 = vunpack.c.h.b16 %v794
    %v1016 = vunpack.c.l.b16 %v795
    %v1017 = vunpack.c.h.b16 %v795
    %v1018 = vunpack.c.l.b16 %v796
    %v1019 = vunpack.c.h.b16 %v796
    %v1020 = vunpack.c.l.b16 %v797
    %v1021 = vunpack.c.h.b16 %v797
    %v1022 = vunpack.c.l.b16 %v798
    %v1023 = vunpack.c.h.b16 %v798
    %v1024 = vunpack.c.l.b16 %v799
    %v1025 = vunpack.c.h.b16 %v799
    %v1026 = vunpack.c.l.b16 %v800
    %v1027 = vunpack.c.h.b16 %v800
    %v1028 = vunpack.c.l.b16 %v801
    %v1029 = vunpack.c.h.b16 %v801
    %v1030 = vunpack.c.l.b16 %v802
    %v1031 = vunpack.c.h.b16 %v802
    %v1032 = vunpack.c.l.b16 %v803
    %v1033 = vunpack.c.h.b16 %v803
    %v1034 = vunpack.c.l.b16 %v804
    %v1035 = vunpack.c.h.b16 %v804
    %v1036 = vunpack.c.l.b16 %v805
    %v1037 = vunpack.c.h.b16 %v805
    %v1038 = vunpack.c.l.b16 %v806
    %v1039 = vunpack.c.h.b16 %v806
    %v1040 = vunpack.c.l.b16 %v807
    %v1041 = vunpack.c.h.b16 %v807
    %v1042 = vpack.c.b16 %v922, %v914
    %v1043 = vpack.c.b16 %v923, %v915
    %v1044 = vpack.c.b16 %v924, %v916
    %v1045 = vpack.c.b16 %v925, %v917
    %v1046 = vpack.c.b16 %v926, %v918
    %v1047 = vpack.c.b16 %v927, %v919
    %v1048 = vpack.c.b16 %v928, %v920
    %v1049 = vpack.c.b16 %v929, %v921
    %v1050 = vpack.c.b16 %v938, %v930
    %v1051 = vpack.c.b16 %v939, %v931
    %v1052 = vpack.c.b16 %v940, %v932
    %v1053 = vpack.c.b16 %v941, %v933
    %v1054 = vpack.c.b16 %v942, %v934
    %v1055 = vpack.c.b16 %v943, %v935
    %v1056 = vpack.c.b16 %v944, %v936
    %v1057 = vpack.c.b16 %v945, %v937
    %v1058 = vpack.c.b16 %v954, %v946
    %v1059 = vpack.c.b16 %v955, %v947
    %v1060 = vpack.c.b16 %v956, %v948
    %v1061 = vpack.c.b16 %v957, %v949
    %v1062 = vpack.c.b16 %v958, %v950
    %v1063 = vpack.c.b16 %v959, %v951
    %v1064 = vpack.c.b16 %v960, %v952
    %v1065 = vpack.c.b16 %v961, %v953
    %v1066 = vpack.c.b16 %v970, %v962
    %v1067 = vpack.c.b16 %v971, %v963
    %v1068 = vpack.c.b16 %v972, %v964
    %v1069 = vpack.c.b16 %v973, %v965
    %v1070 = vpack.c.b16 %v974, %v966
    %v1071 = vpack.c.b16 %v975, %v967
    %v1072 = vpack.c.b16 %v976, %v968
    %v1073 = vpack.c.b16 %v977, %v969
    %v1074 = vpack.c.b16 %v986, %v978
    %v1075 = vpack.c.b16 %v987, %v979
    %v1076 = vpack.c.b16 %v988, %v980
    %v1077 = vpack.c.b16 %v989, %v981
    %v1078 = vpack.c.b16 %v990, %v982
    %v1079 = vpack.c.b16 %v991, %v983
    %v1080 = vpack.c.b16 %v992, %v984
    %v1081 = vpack.c.b16 %v993, %v985
    %v1082 = vpack.c.b16 %v1002, %v994
    %v1083 = vpack.c.b16 %v1003, %v995
    %v1084 = vpack.c.b16 %v1004, %v996
    %v1085 = vpack.c.b16 %v1005, %v997
    %v1086 = vpack.c.b16 %v1006, %v998
    %v1087 = vpack.c.b16 %v1007, %v999
    %v1088 = vpack.c.b16 %v1008, %v1000
    %v1089 = vpack.c.b16 %v1009, %v1001
    %v1090 = vpack.c.b16 %v1018, %v1010
    %v1091 = vpack.c.b16 %v1019, %v1011
    %v1092 = vpack.c.b16 %v1020, %v1012
    %v1093 = vpack.c.b16 %v1021, %v1013
    %v1094 = vpack.c.b16 %v1022, %v1014
    %v1095 = vpack.c.b16 %v1023, %v1015
    %v1096 = vpack.c.b16 %v1024, %v1016
    %v1097 = vpack.c.b16 %v1025, %v1017
    %v1098 = vpack.c.b16 %v1034, %v1026
    %v1099 = vpack.c.b16 %v1035, %v1027
    %v1100 = vpack.c.b16 %v1036, %v1028
    %v1101 = vpack.c.b16 %v1037, %v1029
    %v1102 = vpack.c.b16 %v1038, %v1030
    %v1103 = vpack.c.b16 %v1039, %v1031
    %v1104 = vpack.c.b16 %v1040, %v1032
    %v1105 = vpack.c.b16 %v1041, %v1033
    %1170 = vmatprep.subr.bf16.mxu0 %v1099
    %1171 = vmatpush1.bf16.msra.mxu0 %v1098
    %1172 = vmatprep.subr.bf16.mxu0 %v1091
    %1173 = vmatpush1.bf16.msra.mxu0 %v1090
    %1174 = vmatprep.subr.bf16.mxu0 %v1083
    %1175 = vmatpush1.bf16.msra.mxu0 %v1082
    %1176 = vmatprep.subr.bf16.mxu0 %v1075
    %1177 = vmatpush1.bf16.msra.mxu0 %v1074
    %1178 = vmatprep.subr.bf16.mxu0 %v1067
    %1179 = vmatpush1.bf16.msra.mxu0 %v1066
    %1180 = vmatprep.subr.bf16.mxu0 %v1059
    %1181 = vmatpush1.bf16.msra.mxu0 %v1058
    %1182 = vmatprep.subr.bf16.mxu0 %v1051
    %1183 = vmatpush1.bf16.msra.mxu0 %v1050
    %1184 = vmatprep.subr.bf16.mxu0 %v1043
    %1185 = vmatpush1.bf16.msra.mxu0 %v1042
    %1186 = vmatprep.subr.bf16.mxu0 0
    %1187 = vmatpush2.bf16.msra.mxu0 0
    %1188 = vmatprep.subr.bf16.mxu0 0
    %1189 = vmatpush2.bf16.msra.mxu0 0
    %1190 = vmatprep.subr.bf16.mxu0 0
    %1191 = vmatpush2.bf16.msra.mxu0 0
    %1192 = vmatprep.subr.bf16.mxu0 0
    %1193 = vmatpush2.bf16.msra.mxu0 0
    %1194 = vmatprep.subr.bf16.mxu0 0
    %1195 = vmatpush2.bf16.msra.mxu0 0
    %1196 = vmatprep.subr.bf16.mxu0 0
    %1197 = vmatpush2.bf16.msra.mxu0 0
    %1198 = vmatprep.subr.bf16.mxu0 0
    %1199 = vmatpush2.bf16.msra.mxu0 0
    %1200 = vmatprep.subr.bf16.mxu0 0
    %1201 = vmatpush2.bf16.msra.mxu0 0
    %1202 = vmatprep.mubr.bf16.mxu0 0
    %1203 = vmatmul.mubr.bf16.gmra.mxu0 %v743
    %v1204 = vpop.f32.mrf.mxu0
    %v1205 = vadd.f32 %v813, %v1204
    %v1206 = vpop.f32.mrf.mxu0
    %v1207 = vadd.f32 %v817, %v1206
    %v1208 = vpop.f32.mrf.mxu0
    %v1209 = vpop.f32.mrf.mxu0
    %1210 = vdwg.mxu0
    %1211 = vmatprep.subr.bf16.mxu0 %v1101
    %1212 = vmatpush1.bf16.msra.mxu0 %v1100
    %1213 = vmatprep.subr.bf16.mxu0 %v1093
    %1214 = vmatpush1.bf16.msra.mxu0 %v1092
    %1215 = vmatprep.subr.bf16.mxu0 %v1085
    %1216 = vmatpush1.bf16.msra.mxu0 %v1084
    %1217 = vmatprep.subr.bf16.mxu0 %v1077
    %1218 = vmatpush1.bf16.msra.mxu0 %v1076
    %1219 = vmatprep.subr.bf16.mxu0 %v1069
    %1220 = vmatpush1.bf16.msra.mxu0 %v1068
    %1221 = vmatprep.subr.bf16.mxu0 %v1061
    %1222 = vmatpush1.bf16.msra.mxu0 %v1060
    %1223 = vmatprep.subr.bf16.mxu0 %v1053
    %1224 = vmatpush1.bf16.msra.mxu0 %v1052
    %1225 = vmatprep.subr.bf16.mxu0 %v1045
    %1226 = vmatpush1.bf16.msra.mxu0 %v1044
    %1227 = vmatprep.subr.bf16.mxu0 0
    %1228 = vmatpush2.bf16.msra.mxu0 0
    %1229 = vmatprep.subr.bf16.mxu0 0
    %1230 = vmatpush2.bf16.msra.mxu0 0
    %1231 = vmatprep.subr.bf16.mxu0 0
    %1232 = vmatpush2.bf16.msra.mxu0 0
    %1233 = vmatprep.subr.bf16.mxu0 0
    %1234 = vmatpush2.bf16.msra.mxu0 0
    %1235 = vmatprep.subr.bf16.mxu0 0
    %1236 = vmatpush2.bf16.msra.mxu0 0
    %1237 = vmatprep.subr.bf16.mxu0 0
    %1238 = vmatpush2.bf16.msra.mxu0 0
    %1239 = vmatprep.subr.bf16.mxu0 0
    %1240 = vmatpush2.bf16.msra.mxu0 0
    %1241 = vmatprep.subr.bf16.mxu0 0
    %1242 = vmatpush2.bf16.msra.mxu0 0
    %1243 = vmatprep.mubr.bf16.mxu0 0
    %1244 = vmatmul.mubr.bf16.gmra.mxu0 %v743
    %v1245 = vpop.f32.mrf.mxu0
    %v1246 = vadd.f32 %v821, %v1245
    %v1247 = vpop.f32.mrf.mxu0
    %v1248 = vadd.f32 %v825, %v1247
    %v1249 = vpop.f32.mrf.mxu0
    %v1250 = vpop.f32.mrf.mxu0
    %1251 = vdwg.mxu0
    %1252 = vmatprep.subr.bf16.mxu0 %v1103
    %1253 = vmatpush1.bf16.msra.mxu0 %v1102
    %1254 = vmatprep.subr.bf16.mxu0 %v1095
    %1255 = vmatpush1.bf16.msra.mxu0 %v1094
    %1256 = vmatprep.subr.bf16.mxu0 %v1087
    %1257 = vmatpush1.bf16.msra.mxu0 %v1086
    %1258 = vmatprep.subr.bf16.mxu0 %v1079
    %1259 = vmatpush1.bf16.msra.mxu0 %v1078
    %1260 = vmatprep.subr.bf16.mxu0 %v1071
    %1261 = vmatpush1.bf16.msra.mxu0 %v1070
    %1262 = vmatprep.subr.bf16.mxu0 %v1063
    %1263 = vmatpush1.bf16.msra.mxu0 %v1062
    %1264 = vmatprep.subr.bf16.mxu0 %v1055
    %1265 = vmatpush1.bf16.msra.mxu0 %v1054
    %1266 = vmatprep.subr.bf16.mxu0 %v1047
    %1267 = vmatpush1.bf16.msra.mxu0 %v1046
    %1268 = vmatprep.subr.bf16.mxu0 0
    %1269 = vmatpush2.bf16.msra.mxu0 0
    %1270 = vmatprep.subr.bf16.mxu0 0
    %1271 = vmatpush2.bf16.msra.mxu0 0
    %1272 = vmatprep.subr.bf16.mxu0 0
    %1273 = vmatpush2.bf16.msra.mxu0 0
    %1274 = vmatprep.subr.bf16.mxu0 0
    %1275 = vmatpush2.bf16.msra.mxu0 0
    %1276 = vmatprep.subr.bf16.mxu0 0
    %1277 = vmatpush2.bf16.msra.mxu0 0
    %1278 = vmatprep.subr.bf16.mxu0 0
    %1279 = vmatpush2.bf16.msra.mxu0 0
    %1280 = vmatprep.subr.bf16.mxu0 0
    %1281 = vmatpush2.bf16.msra.mxu0 0
    %1282 = vmatprep.subr.bf16.mxu0 0
    %1283 = vmatpush2.bf16.msra.mxu0 0
    %1284 = vmatprep.mubr.bf16.mxu0 0
    %1285 = vmatmul.mubr.bf16.gmra.mxu0 %v743
    %v1286 = vpop.f32.mrf.mxu0
    %v1287 = vadd.f32 %v829, %v1286
    %v1288 = vpop.f32.mrf.mxu0
    %v1289 = vadd.f32 %v833, %v1288
    %v1290 = vpop.f32.mrf.mxu0
    %v1291 = vpop.f32.mrf.mxu0
    %1292 = vdwg.mxu0
    %1293 = vmatprep.subr.bf16.mxu0 %v1105
    %1294 = vmatpush1.bf16.msra.mxu0 %v1104
    %1295 = vmatprep.subr.bf16.mxu0 %v1097
    %1296 = vmatpush1.bf16.msra.mxu0 %v1096
    %1297 = vmatprep.subr.bf16.mxu0 %v1089
    %1298 = vmatpush1.bf16.msra.mxu0 %v1088
    %1299 = vmatprep.subr.bf16.mxu0 %v1081
    %1300 = vmatpush1.bf16.msra.mxu0 %v1080
    %1301 = vmatprep.subr.bf16.mxu0 %v1073
    %1302 = vmatpush1.bf16.msra.mxu0 %v1072
    %1303 = vmatprep.subr.bf16.mxu0 %v1065
    %1304 = vmatpush1.bf16.msra.mxu0 %v1064
    %1305 = vmatprep.subr.bf16.mxu0 %v1057
    %1306 = vmatpush1.bf16.msra.mxu0 %v1056
    %1307 = vmatprep.subr.bf16.mxu0 %v1049
    %1308 = vmatpush1.bf16.msra.mxu0 %v1048
    %1309 = vmatprep.subr.bf16.mxu0 0
    %1310 = vmatpush2.bf16.msra.mxu0 0
    %1311 = vmatprep.subr.bf16.mxu0 0
    %1312 = vmatpush2.bf16.msra.mxu0 0
    %1313 = vmatprep.subr.bf16.mxu0 0
    %1314 = vmatpush2.bf16.msra.mxu0 0
    %1315 = vmatprep.subr.bf16.mxu0 0
    %1316 = vmatpush2.bf16.msra.mxu0 0
    %1317 = vmatprep.subr.bf16.mxu0 0
    %1318 = vmatpush2.bf16.msra.mxu0 0
    %1319 = vmatprep.subr.bf16.mxu0 0
    %1320 = vmatpush2.bf16.msra.mxu0 0
    %1321 = vmatprep.subr.bf16.mxu0 0
    %1322 = vmatpush2.bf16.msra.mxu0 0
    %1323 = vmatprep.subr.bf16.mxu0 0
    %1324 = vmatpush2.bf16.msra.mxu0 0
    %1325 = vmatprep.mubr.bf16.mxu0 0
    %1326 = vmatmul.mubr.bf16.gmra.mxu0 %v743
    %v1327 = vpop.f32.mrf.mxu0
    %v1328 = vadd.f32 %v837, %v1327
    %v1329 = vpop.f32.mrf.mxu0
    %v1330 = vadd.f32 %v841, %v1329
    %v1331 = vpop.f32.mrf.mxu0
    %v1332 = vpop.f32.mrf.mxu0
    %1333 = vdwg.mxu0
    %v1334 = vmax.f32 %v1205, 0.0
    %v1335 = vmax.f32 %v1207, 0.0
    %v1336 = vmax.f32 %v1246, 0.0
    %v1337 = vmax.f32 %v1248, 0.0
    %v1338 = vmax.f32 %v1287, 0.0
    %v1339 = vmax.f32 %v1289, 0.0
    %v1340 = vmax.f32 %v1328, 0.0
    %v1341 = vmax.f32 %v1330, 0.0
    %v1342 = vpack.c.bf16 %v1334, %v1334
    %v1343 = vpack.c.bf16 %v1335, %v1335
    %v1344 = vpack.c.bf16 %v1336, %v1336
    %v1345 = vpack.c.bf16 %v1337, %v1337
    %v1346 = vpack.c.bf16 %v1338, %v1338
    %v1347 = vpack.c.bf16 %v1339, %v1339
    %v1348 = vpack.c.bf16 %v1340, %v1340
    %v1349 = vpack.c.bf16 %v1341, %v1341
    %v1350 = vld [vmem:[%s11] sm:$0xf]
    %v1351 = vld [vmem:[%s11 + $0x4] sm:$0xf]
    %v1352 = vld [vmem:[%s11 + $0x8] sm:$0xf]
    %v1353 = vld [vmem:[%s11 + $0xc] sm:$0xf]
    %v1354 = vld [vmem:[%s11 + $0x10] sm:$0xf]
    %v1355 = vld [vmem:[%s11 + $0x14] sm:$0xf]
    %v1356 = vld [vmem:[%s11 + $0x18] sm:$0xf]
    %v1357 = vld [vmem:[%s11 + $0x1c] sm:$0xf]
    %v1358 = vld [vmem:[%s11 + $0x20] sm:$0xf]
    %v1359 = vld [vmem:[%s11 + $0x24] sm:$0xf]
    %v1360 = vld [vmem:[%s11 + $0x28] sm:$0xf]
    %v1361 = vld [vmem:[%s11 + $0x2c] sm:$0xf]
    %v1362 = vld [vmem:[%s11 + $0x30] sm:$0xf]
    %v1363 = vld [vmem:[%s11 + $0x34] sm:$0xf]
    %v1364 = vld [vmem:[%s11 + $0x38] sm:$0xf]
    %v1365 = vld [vmem:[%s11 + $0x3c] sm:$0xf]
    %v1366 = vld [vmem:[%s11 + $0x40] sm:$0xf]
    %v1367 = vld [vmem:[%s11 + $0x44] sm:$0xf]
    %v1368 = vld [vmem:[%s11 + $0x48] sm:$0xf]
    %v1369 = vld [vmem:[%s11 + $0x4c] sm:$0xf]
    %v1370 = vld [vmem:[%s11 + $0x50] sm:$0xf]
    %v1371 = vld [vmem:[%s11 + $0x54] sm:$0xf]
    %v1372 = vld [vmem:[%s11 + $0x58] sm:$0xf]
    %v1373 = vld [vmem:[%s11 + $0x5c] sm:$0xf]
    %v1374 = vld [vmem:[%s11 + $0x60] sm:$0xf]
    %v1375 = vld [vmem:[%s11 + $0x64] sm:$0xf]
    %v1376 = vld [vmem:[%s11 + $0x68] sm:$0xf]
    %v1377 = vld [vmem:[%s11 + $0x6c] sm:$0xf]
    %v1378 = vld [vmem:[%s11 + $0x70] sm:$0xf]
    %v1379 = vld [vmem:[%s11 + $0x74] sm:$0xf]
    %v1380 = vld [vmem:[%s11 + $0x78] sm:$0xf]
    %v1381 = vld [vmem:[%s11 + $0x7c] sm:$0xf]
    %v1382 = vld [vmem:[%s11 + $0x80] sm:$0xf]
    %v1383 = vld [vmem:[%s11 + $0x84] sm:$0xf]
    %v1384 = vld [vmem:[%s11 + $0x88] sm:$0xf]
    %v1385 = vld [vmem:[%s11 + $0x8c] sm:$0xf]
    %v1386 = vld [vmem:[%s11 + $0x90] sm:$0xf]
    %v1387 = vld [vmem:[%s11 + $0x94] sm:$0xf]
    %v1388 = vld [vmem:[%s11 + $0x98] sm:$0xf]
    %v1389 = vld [vmem:[%s11 + $0x9c] sm:$0xf]
    %v1390 = vld [vmem:[%s11 + $0xa0] sm:$0xf]
    %v1391 = vld [vmem:[%s11 + $0xa4] sm:$0xf]
    %v1392 = vld [vmem:[%s11 + $0xa8] sm:$0xf]
    %v1393 = vld [vmem:[%s11 + $0xac] sm:$0xf]
    %v1394 = vld [vmem:[%s11 + $0xb0] sm:$0xf]
    %v1395 = vld [vmem:[%s11 + $0xb4] sm:$0xf]
    %v1396 = vld [vmem:[%s11 + $0xb8] sm:$0xf]
    %v1397 = vld [vmem:[%s11 + $0xbc] sm:$0xf]
    %v1398 = vld [vmem:[%s11 + $0xc0] sm:$0xf]
    %v1399 = vld [vmem:[%s11 + $0xc4] sm:$0xf]
    %v1400 = vld [vmem:[%s11 + $0xc8] sm:$0xf]
    %v1401 = vld [vmem:[%s11 + $0xcc] sm:$0xf]
    %v1402 = vld [vmem:[%s11 + $0xd0] sm:$0xf]
    %v1403 = vld [vmem:[%s11 + $0xd4] sm:$0xf]
    %v1404 = vld [vmem:[%s11 + $0xd8] sm:$0xf]
    %v1405 = vld [vmem:[%s11 + $0xdc] sm:$0xf]
    %v1406 = vld [vmem:[%s11 + $0xe0] sm:$0xf]
    %v1407 = vld [vmem:[%s11 + $0xe4] sm:$0xf]
    %v1408 = vld [vmem:[%s11 + $0xe8] sm:$0xf]
    %v1409 = vld [vmem:[%s11 + $0xec] sm:$0xf]
    %v1410 = vld [vmem:[%s11 + $0xf0] sm:$0xf]
    %v1411 = vld [vmem:[%s11 + $0xf4] sm:$0xf]
    %v1412 = vld [vmem:[%s11 + $0xf8] sm:$0xf]
    %v1413 = vld [vmem:[%s11 + $0xfc] sm:$0xf]
    %v1414 = vld [vmem:[%s11 + $0x100] sm:$0xf]
    %v1415 = vld [vmem:[%s11 + $0x104] sm:$0xf]
    %v1416 = vld [vmem:[%s11 + $0x108] sm:$0xf]
    %v1417 = vld [vmem:[%s11 + $0x10c] sm:$0xf]
    %v1418 = vld [vmem:[%s11 + $0x110] sm:$0xf]
    %v1419 = vld [vmem:[%s11 + $0x114] sm:$0xf]
    %v1420 = vld [vmem:[%s11 + $0x118] sm:$0xf]
    %v1421 = vld [vmem:[%s11 + $0x11c] sm:$0xf]
    %v1422 = vld [vmem:[%s11 + $0x120] sm:$0xf]
    %v1423 = vld [vmem:[%s11 + $0x124] sm:$0xf]
    %v1424 = vld [vmem:[%s11 + $0x128] sm:$0xf]
    %v1425 = vld [vmem:[%s11 + $0x12c] sm:$0xf]
    %v1426 = vld [vmem:[%s11 + $0x130] sm:$0xf]
    %v1427 = vld [vmem:[%s11 + $0x134] sm:$0xf]
    %v1428 = vld [vmem:[%s11 + $0x138] sm:$0xf]
    %v1429 = vld [vmem:[%s11 + $0x13c] sm:$0xf]
    %v1430 = vld [vmem:[%s11 + $0x140] sm:$0xf]
    %v1431 = vld [vmem:[%s11 + $0x144] sm:$0xf]
    %v1432 = vld [vmem:[%s11 + $0x148] sm:$0xf]
    %v1433 = vld [vmem:[%s11 + $0x14c] sm:$0xf]
    %v1434 = vld [vmem:[%s11 + $0x150] sm:$0xf]
    %v1435 = vld [vmem:[%s11 + $0x154] sm:$0xf]
    %v1436 = vld [vmem:[%s11 + $0x158] sm:$0xf]
    %v1437 = vld [vmem:[%s11 + $0x15c] sm:$0xf]
    %v1438 = vld [vmem:[%s11 + $0x160] sm:$0xf]
    %v1439 = vld [vmem:[%s11 + $0x164] sm:$0xf]
    %v1440 = vld [vmem:[%s11 + $0x168] sm:$0xf]
    %v1441 = vld [vmem:[%s11 + $0x16c] sm:$0xf]
    %v1442 = vld [vmem:[%s11 + $0x170] sm:$0xf]
    %v1443 = vld [vmem:[%s11 + $0x174] sm:$0xf]
    %v1444 = vld [vmem:[%s11 + $0x178] sm:$0xf]
    %v1445 = vld [vmem:[%s11 + $0x17c] sm:$0xf]
    %v1446 = vld [vmem:[%s11 + $0x180] sm:$0xf]
    %v1447 = vld [vmem:[%s11 + $0x184] sm:$0xf]
    %v1448 = vld [vmem:[%s11 + $0x188] sm:$0xf]
    %v1449 = vld [vmem:[%s11 + $0x18c] sm:$0xf]
    %v1450 = vld [vmem:[%s11 + $0x190] sm:$0xf]
    %v1451 = vld [vmem:[%s11 + $0x194] sm:$0xf]
    %v1452 = vld [vmem:[%s11 + $0x198] sm:$0xf]
    %v1453 = vld [vmem:[%s11 + $0x19c] sm:$0xf]
    %v1454 = vld [vmem:[%s11 + $0x1a0] sm:$0xf]
    %v1455 = vld [vmem:[%s11 + $0x1a4] sm:$0xf]
    %v1456 = vld [vmem:[%s11 + $0x1a8] sm:$0xf]
    %v1457 = vld [vmem:[%s11 + $0x1ac] sm:$0xf]
    %v1458 = vld [vmem:[%s11 + $0x1b0] sm:$0xf]
    %v1459 = vld [vmem:[%s11 + $0x1b4] sm:$0xf]
    %v1460 = vld [vmem:[%s11 + $0x1b8] sm:$0xf]
    %v1461 = vld [vmem:[%s11 + $0x1bc] sm:$0xf]
    %v1462 = vld [vmem:[%s11 + $0x1c0] sm:$0xf]
    %v1463 = vld [vmem:[%s11 + $0x1c4] sm:$0xf]
    %v1464 = vld [vmem:[%s11 + $0x1c8] sm:$0xf]
    %v1465 = vld [vmem:[%s11 + $0x1cc] sm:$0xf]
    %v1466 = vld [vmem:[%s11 + $0x1d0] sm:$0xf]
    %v1467 = vld [vmem:[%s11 + $0x1d4] sm:$0xf]
    %v1468 = vld [vmem:[%s11 + $0x1d8] sm:$0xf]
    %v1469 = vld [vmem:[%s11 + $0x1dc] sm:$0xf]
    %v1470 = vld [vmem:[%s11 + $0x1e0] sm:$0xf]
    %v1471 = vld [vmem:[%s11 + $0x1e4] sm:$0xf]
    %v1472 = vld [vmem:[%s11 + $0x1e8] sm:$0xf]
    %v1473 = vld [vmem:[%s11 + $0x1ec] sm:$0xf]
    %v1474 = vld [vmem:[%s11 + $0x1f0] sm:$0xf]
    %v1475 = vld [vmem:[%s11 + $0x1f4] sm:$0xf]
    %v1476 = vld [vmem:[%s11 + $0x1f8] sm:$0xf]
    %v1477 = vld [vmem:[%s11 + $0x1fc] sm:$0xf]
    %v1606 = vunpack.c.l.b16 %v1350
    %v1607 = vunpack.c.l.b16 %v1351
    %v1608 = vunpack.c.l.b16 %v1352
    %v1609 = vunpack.c.l.b16 %v1353
    %v1610 = vunpack.c.l.b16 %v1354
    %v1611 = vunpack.c.l.b16 %v1355
    %v1612 = vunpack.c.l.b16 %v1356
    %v1613 = vunpack.c.l.b16 %v1357
    %v1614 = vunpack.c.l.b16 %v1358
    %v1615 = vunpack.c.l.b16 %v1359
    %v1616 = vunpack.c.l.b16 %v1360
    %v1617 = vunpack.c.l.b16 %v1361
    %v1618 = vunpack.c.l.b16 %v1362
    %v1619 = vunpack.c.l.b16 %v1363
    %v1620 = vunpack.c.l.b16 %v1364
    %v1621 = vunpack.c.l.b16 %v1365
    %v1622 = vunpack.c.l.b16 %v1366
    %v1623 = vunpack.c.l.b16 %v1367
    %v1624 = vunpack.c.l.b16 %v1368
    %v1625 = vunpack.c.l.b16 %v1369
    %v1626 = vunpack.c.l.b16 %v1370
    %v1627 = vunpack.c.l.b16 %v1371
    %v1628 = vunpack.c.l.b16 %v1372
    %v1629 = vunpack.c.l.b16 %v1373
    %v1630 = vunpack.c.l.b16 %v1374
    %v1631 = vunpack.c.l.b16 %v1375
    %v1632 = vunpack.c.l.b16 %v1376
    %v1633 = vunpack.c.l.b16 %v1377
    %v1634 = vunpack.c.l.b16 %v1378
    %v1635 = vunpack.c.l.b16 %v1379
    %v1636 = vunpack.c.l.b16 %v1380
    %v1637 = vunpack.c.l.b16 %v1381
    %v1638 = vunpack.c.l.b16 %v1382
    %v1639 = vunpack.c.l.b16 %v1383
    %v1640 = vunpack.c.l.b16 %v1384
    %v1641 = vunpack.c.l.b16 %v1385
    %v1642 = vunpack.c.l.b16 %v1386
    %v1643 = vunpack.c.l.b16 %v1387
    %v1644 = vunpack.c.l.b16 %v1388
    %v1645 = vunpack.c.l.b16 %v1389
    %v1646 = vunpack.c.l.b16 %v1390
    %v1647 = vunpack.c.l.b16 %v1391
    %v1648 = vunpack.c.l.b16 %v1392
    %v1649 = vunpack.c.l.b16 %v1393
    %v1650 = vunpack.c.l.b16 %v1394
    %v1651 = vunpack.c.l.b16 %v1395
    %v1652 = vunpack.c.l.b16 %v1396
    %v1653 = vunpack.c.l.b16 %v1397
    %v1654 = vunpack.c.l.b16 %v1398
    %v1655 = vunpack.c.l.b16 %v1399
    %v1656 = vunpack.c.l.b16 %v1400
    %v1657 = vunpack.c.l.b16 %v1401
    %v1658 = vunpack.c.l.b16 %v1402
    %v1659 = vunpack.c.l.b16 %v1403
    %v1660 = vunpack.c.l.b16 %v1404
    %v1661 = vunpack.c.l.b16 %v1405
    %v1662 = vunpack.c.l.b16 %v1406
    %v1663 = vunpack.c.l.b16 %v1407
    %v1664 = vunpack.c.l.b16 %v1408
    %v1665 = vunpack.c.l.b16 %v1409
    %v1666 = vunpack.c.l.b16 %v1410
    %v1667 = vunpack.c.l.b16 %v1411
    %v1668 = vunpack.c.l.b16 %v1412
    %v1669 = vunpack.c.l.b16 %v1413
    %v1670 = vunpack.c.l.b16 %v1414
    %v1671 = vunpack.c.l.b16 %v1415
    %v1672 = vunpack.c.l.b16 %v1416
    %v1673 = vunpack.c.l.b16 %v1417
    %v1674 = vunpack.c.l.b16 %v1418
    %v1675 = vunpack.c.l.b16 %v1419
    %v1676 = vunpack.c.l.b16 %v1420
    %v1677 = vunpack.c.l.b16 %v1421
    %v1678 = vunpack.c.l.b16 %v1422
    %v1679 = vunpack.c.l.b16 %v1423
    %v1680 = vunpack.c.l.b16 %v1424
    %v1681 = vunpack.c.l.b16 %v1425
    %v1682 = vunpack.c.l.b16 %v1426
    %v1683 = vunpack.c.l.b16 %v1427
    %v1684 = vunpack.c.l.b16 %v1428
    %v1685 = vunpack.c.l.b16 %v1429
    %v1686 = vunpack.c.l.b16 %v1430
    %v1687 = vunpack.c.l.b16 %v1431
    %v1688 = vunpack.c.l.b16 %v1432
    %v1689 = vunpack.c.l.b16 %v1433
    %v1690 = vunpack.c.l.b16 %v1434
    %v1691 = vunpack.c.l.b16 %v1435
    %v1692 = vunpack.c.l.b16 %v1436
    %v1693 = vunpack.c.l.b16 %v1437
    %v1694 = vunpack.c.l.b16 %v1438
    %v1695 = vunpack.c.l.b16 %v1439
    %v1696 = vunpack.c.l.b16 %v1440
    %v1697 = vunpack.c.l.b16 %v1441
    %v1698 = vunpack.c.l.b16 %v1442
    %v1699 = vunpack.c.l.b16 %v1443
    %v1700 = vunpack.c.l.b16 %v1444
    %v1701 = vunpack.c.l.b16 %v1445
    %v1702 = vunpack.c.l.b16 %v1446
    %v1703 = vunpack.c.l.b16 %v1447
    %v1704 = vunpack.c.l.b16 %v1448
    %v1705 = vunpack.c.l.b16 %v1449
    %v1706 = vunpack.c.l.b16 %v1450
    %v1707 = vunpack.c.l.b16 %v1451
    %v1708 = vunpack.c.l.b16 %v1452
    %v1709 = vunpack.c.l.b16 %v1453
    %v1710 = vunpack.c.l.b16 %v1454
    %v1711 = vunpack.c.l.b16 %v1455
    %v1712 = vunpack.c.l.b16 %v1456
    %v1713 = vunpack.c.l.b16 %v1457
    %v1714 = vunpack.c.l.b16 %v1458
    %v1715 = vunpack.c.l.b16 %v1459
    %v1716 = vunpack.c.l.b16 %v1460
    %v1717 = vunpack.c.l.b16 %v1461
    %v1718 = vunpack.c.l.b16 %v1462
    %v1719 = vunpack.c.l.b16 %v1463
    %v1720 = vunpack.c.l.b16 %v1464
    %v1721 = vunpack.c.l.b16 %v1465
    %v1722 = vunpack.c.l.b16 %v1466
    %v1723 = vunpack.c.l.b16 %v1467
    %v1724 = vunpack.c.l.b16 %v1468
    %v1725 = vunpack.c.l.b16 %v1469
    %v1726 = vunpack.c.l.b16 %v1470
    %v1727 = vunpack.c.l.b16 %v1471
    %v1728 = vunpack.c.l.b16 %v1472
    %v1729 = vunpack.c.l.b16 %v1473
    %v1730 = vunpack.c.l.b16 %v1474
    %v1731 = vunpack.c.l.b16 %v1475
    %v1732 = vunpack.c.l.b16 %v1476
    %v1733 = vunpack.c.l.b16 %v1477
    %v1734 = vpack.c.b16 %v1607, %v1606
    %v1735 = vpack.c.b16 %v1609, %v1608
    %v1736 = vpack.c.b16 %v1611, %v1610
    %v1737 = vpack.c.b16 %v1613, %v1612
    %v1738 = vpack.c.b16 %v1615, %v1614
    %v1739 = vpack.c.b16 %v1617, %v1616
    %v1740 = vpack.c.b16 %v1619, %v1618
    %v1741 = vpack.c.b16 %v1621, %v1620
    %v1742 = vpack.c.b16 %v1623, %v1622
    %v1743 = vpack.c.b16 %v1625, %v1624
    %v1744 = vpack.c.b16 %v1627, %v1626
    %v1745 = vpack.c.b16 %v1629, %v1628
    %v1746 = vpack.c.b16 %v1631, %v1630
    %v1747 = vpack.c.b16 %v1633, %v1632
    %v1748 = vpack.c.b16 %v1635, %v1634
    %v1749 = vpack.c.b16 %v1637, %v1636
    %v1750 = vpack.c.b16 %v1639, %v1638
    %v1751 = vpack.c.b16 %v1641, %v1640
    %v1752 = vpack.c.b16 %v1643, %v1642
    %v1753 = vpack.c.b16 %v1645, %v1644
    %v1754 = vpack.c.b16 %v1647, %v1646
    %v1755 = vpack.c.b16 %v1649, %v1648
    %v1756 = vpack.c.b16 %v1651, %v1650
    %v1757 = vpack.c.b16 %v1653, %v1652
    %v1758 = vpack.c.b16 %v1655, %v1654
    %v1759 = vpack.c.b16 %v1657, %v1656
    %v1760 = vpack.c.b16 %v1659, %v1658
    %v1761 = vpack.c.b16 %v1661, %v1660
    %v1762 = vpack.c.b16 %v1663, %v1662
    %v1763 = vpack.c.b16 %v1665, %v1664
    %v1764 = vpack.c.b16 %v1667, %v1666
    %v1765 = vpack.c.b16 %v1669, %v1668
    %v1766 = vpack.c.b16 %v1671, %v1670
    %v1767 = vpack.c.b16 %v1673, %v1672
    %v1768 = vpack.c.b16 %v1675, %v1674
    %v1769 = vpack.c.b16 %v1677, %v1676
    %v1770 = vpack.c.b16 %v1679, %v1678
    %v1771 = vpack.c.b16 %v1681, %v1680
    %v1772 = vpack.c.b16 %v1683, %v1682
    %v1773 = vpack.c.b16 %v1685, %v1684
    %v1774 = vpack.c.b16 %v1687, %v1686
    %v1775 = vpack.c.b16 %v1689, %v1688
    %v1776 = vpack.c.b16 %v1691, %v1690
    %v1777 = vpack.c.b16 %v1693, %v1692
    %v1778 = vpack.c.b16 %v1695, %v1694
    %v1779 = vpack.c.b16 %v1697, %v1696
    %v1780 = vpack.c.b16 %v1699, %v1698
    %v1781 = vpack.c.b16 %v1701, %v1700
    %v1782 = vpack.c.b16 %v1703, %v1702
    %v1783 = vpack.c.b16 %v1705, %v1704
    %v1784 = vpack.c.b16 %v1707, %v1706
    %v1785 = vpack.c.b16 %v1709, %v1708
    %v1786 = vpack.c.b16 %v1711, %v1710
    %v1787 = vpack.c.b16 %v1713, %v1712
    %v1788 = vpack.c.b16 %v1715, %v1714
    %v1789 = vpack.c.b16 %v1717, %v1716
    %v1790 = vpack.c.b16 %v1719, %v1718
    %v1791 = vpack.c.b16 %v1721, %v1720
    %v1792 = vpack.c.b16 %v1723, %v1722
    %v1793 = vpack.c.b16 %v1725, %v1724
    %v1794 = vpack.c.b16 %v1727, %v1726
    %v1795 = vpack.c.b16 %v1729, %v1728
    %v1796 = vpack.c.b16 %v1731, %v1730
    %v1797 = vpack.c.b16 %v1733, %v1732
    %1862 = vmatprep.subr.bf16.mxu0 0
    %1863 = vmatpush1.bf16.msra.mxu0 %v1741
    %1864 = vmatprep.subr.bf16.mxu0 0
    %1865 = vmatpush1.bf16.msra.mxu0 %v1740
    %1866 = vmatprep.subr.bf16.mxu0 0
    %1867 = vmatpush1.bf16.msra.mxu0 %v1739
    %1868 = vmatprep.subr.bf16.mxu0 0
    %1869 = vmatpush1.bf16.msra.mxu0 %v1738
    %1870 = vmatprep.subr.bf16.mxu0 0
    %1871 = vmatpush1.bf16.msra.mxu0 %v1737
    %1872 = vmatprep.subr.bf16.mxu0 0
    %1873 = vmatpush1.bf16.msra.mxu0 %v1736
    %1874 = vmatprep.subr.bf16.mxu0 0
    %1875 = vmatpush1.bf16.msra.mxu0 %v1735
    %1876 = vmatprep.subr.bf16.mxu0 0
    %1877 = vmatpush1.bf16.msra.mxu0 %v1734
    %1878 = vmatprep.subr.bf16.mxu0 0
    %1879 = vmatpush2.bf16.msra.mxu0 %v1749
    %1880 = vmatprep.subr.bf16.mxu0 0
    %1881 = vmatpush2.bf16.msra.mxu0 %v1748
    %1882 = vmatprep.subr.bf16.mxu0 0
    %1883 = vmatpush2.bf16.msra.mxu0 %v1747
    %1884 = vmatprep.subr.bf16.mxu0 0
    %1885 = vmatpush2.bf16.msra.mxu0 %v1746
    %1886 = vmatprep.subr.bf16.mxu0 0
    %1887 = vmatpush2.bf16.msra.mxu0 %v1745
    %1888 = vmatprep.subr.bf16.mxu0 0
    %1889 = vmatpush2.bf16.msra.mxu0 %v1744
    %1890 = vmatprep.subr.bf16.mxu0 0
    %1891 = vmatpush2.bf16.msra.mxu0 %v1743
    %1892 = vmatprep.subr.bf16.mxu0 0
    %1893 = vmatpush2.bf16.msra.mxu0 %v1742
    %1894 = vmatprep.mubr.bf16.mxu0 %v1343
    %1895 = vmatmul.mubr.bf16.gmra.mxu0 %v1342
    %v1896 = vpop.f32.mrf.mxu0
    %v1897 = vadd.f32 0.0, %v1896
    %v1898 = vpop.f32.mrf.mxu0
    %v1899 = vpop.f32.mrf.mxu0
    %v1900 = vpop.f32.mrf.mxu0
    %1901 = vdwg.mxu0
    %1902 = vmatprep.subr.bf16.mxu0 0
    %1903 = vmatpush1.bf16.msra.mxu0 %v1757
    %1904 = vmatprep.subr.bf16.mxu0 0
    %1905 = vmatpush1.bf16.msra.mxu0 %v1756
    %1906 = vmatprep.subr.bf16.mxu0 0
    %1907 = vmatpush1.bf16.msra.mxu0 %v1755
    %1908 = vmatprep.subr.bf16.mxu0 0
    %1909 = vmatpush1.bf16.msra.mxu0 %v1754
    %1910 = vmatprep.subr.bf16.mxu0 0
    %1911 = vmatpush1.bf16.msra.mxu0 %v1753
    %1912 = vmatprep.subr.bf16.mxu0 0
    %1913 = vmatpush1.bf16.msra.mxu0 %v1752
    %1914 = vmatprep.subr.bf16.mxu0 0
    %1915 = vmatpush1.bf16.msra.mxu0 %v1751
    %1916 = vmatprep.subr.bf16.mxu0 0
    %1917 = vmatpush1.bf16.msra.mxu0 %v1750
    %1918 = vmatprep.subr.bf16.mxu0 0
    %1919 = vmatpush2.bf16.msra.mxu0 %v1765
    %1920 = vmatprep.subr.bf16.mxu0 0
    %1921 = vmatpush2.bf16.msra.mxu0 %v1764
    %1922 = vmatprep.subr.bf16.mxu0 0
    %1923 = vmatpush2.bf16.msra.mxu0 %v1763
    %1924 = vmatprep.subr.bf16.mxu0 0
    %1925 = vmatpush2.bf16.msra.mxu0 %v1762
    %1926 = vmatprep.subr.bf16.mxu0 0
    %1927 = vmatpush2.bf16.msra.mxu0 %v1761
    %1928 = vmatprep.subr.bf16.mxu0 0
    %1929 = vmatpush2.bf16.msra.mxu0 %v1760
    %1930 = vmatprep.subr.bf16.mxu0 0
    %1931 = vmatpush2.bf16.msra.mxu0 %v1759
    %1932 = vmatprep.subr.bf16.mxu0 0
    %1933 = vmatpush2.bf16.msra.mxu0 %v1758
    %1934 = vmatprep.mubr.bf16.mxu0 %v1345
    %1935 = vmatmul.mubr.bf16.gmra.mxu0 %v1344
    %v1936 = vpop.f32.mrf.mxu0
    %v1937 = vadd.f32 %v1897, %v1936
    %v1938 = vpop.f32.mrf.mxu0
    %v1939 = vpop.f32.mrf.mxu0
    %v1940 = vpop.f32.mrf.mxu0
    %1941 = vdwg.mxu0
    %1942 = vmatprep.subr.bf16.mxu0 0
    %1943 = vmatpush1.bf16.msra.mxu0 %v1773
    %1944 = vmatprep.subr.bf16.mxu0 0
    %1945 = vmatpush1.bf16.msra.mxu0 %v1772
    %1946 = vmatprep.subr.bf16.mxu0 0
    %1947 = vmatpush1.bf16.msra.mxu0 %v1771
    %1948 = vmatprep.subr.bf16.mxu0 0
    %1949 = vmatpush1.bf16.msra.mxu0 %v1770
    %1950 = vmatprep.subr.bf16.mxu0 0
    %1951 = vmatpush1.bf16.msra.mxu0 %v1769
    %1952 = vmatprep.subr.bf16.mxu0 0
    %1953 = vmatpush1.bf16.msra.mxu0 %v1768
    %1954 = vmatprep.subr.bf16.mxu0 0
    %1955 = vmatpush1.bf16.msra.mxu0 %v1767
    %1956 = vmatprep.subr.bf16.mxu0 0
    %1957 = vmatpush1.bf16.msra.mxu0 %v1766
    %1958 = vmatprep.subr.bf16.mxu0 0
    %1959 = vmatpush2.bf16.msra.mxu0 %v1781
    %1960 = vmatprep.subr.bf16.mxu0 0
    %1961 = vmatpush2.bf16.msra.mxu0 %v1780
    %1962 = vmatprep.subr.bf16.mxu0 0
    %1963 = vmatpush2.bf16.msra.mxu0 %v1779
    %1964 = vmatprep.subr.bf16.mxu0 0
    %1965 = vmatpush2.bf16.msra.mxu0 %v1778
    %1966 = vmatprep.subr.bf16.mxu0 0
    %1967 = vmatpush2.bf16.msra.mxu0 %v1777
    %1968 = vmatprep.subr.bf16.mxu0 0
    %1969 = vmatpush2.bf16.msra.mxu0 %v1776
    %1970 = vmatprep.subr.bf16.mxu0 0
    %1971 = vmatpush2.bf16.msra.mxu0 %v1775
    %1972 = vmatprep.subr.bf16.mxu0 0
    %1973 = vmatpush2.bf16.msra.mxu0 %v1774
    %1974 = vmatprep.mubr.bf16.mxu0 %v1347
    %1975 = vmatmul.mubr.bf16.gmra.mxu0 %v1346
    %v1976 = vpop.f32.mrf.mxu0
    %v1977 = vadd.f32 %v1937, %v1976
    %v1978 = vpop.f32.mrf.mxu0
    %v1979 = vpop.f32.mrf.mxu0
    %v1980 = vpop.f32.mrf.mxu0
    %1981 = vdwg.mxu0
    %1982 = vmatprep.subr.bf16.mxu0 0
    %1983 = vmatpush1.bf16.msra.mxu0 %v1789
    %1984 = vmatprep.subr.bf16.mxu0 0
    %1985 = vmatpush1.bf16.msra.mxu0 %v1788
    %1986 = vmatprep.subr.bf16.mxu0 0
    %1987 = vmatpush1.bf16.msra.mxu0 %v1787
    %1988 = vmatprep.subr.bf16.mxu0 0
    %1989 = vmatpush1.bf16.msra.mxu0 %v1786
    %1990 = vmatprep.subr.bf16.mxu0 0
    %1991 = vmatpush1.bf16.msra.mxu0 %v1785
    %1992 = vmatprep.subr.bf16.mxu0 0
    %1993 = vmatpush1.bf16.msra.mxu0 %v1784
    %1994 = vmatprep.subr.bf16.mxu0 0
    %1995 = vmatpush1.bf16.msra.mxu0 %v1783
    %1996 = vmatprep.subr.bf16.mxu0 0
    %1997 = vmatpush1.bf16.msra.mxu0 %v1782
    %1998 = vmatprep.subr.bf16.mxu0 0
    %1999 = vmatpush2.bf16.msra.mxu0 %v1797
    %2000 = vmatprep.subr.bf16.mxu0 0
    %2001 = vmatpush2.bf16.msra.mxu0 %v1796
    %2002 = vmatprep.subr.bf16.mxu0 0
    %2003 = vmatpush2.bf16.msra.mxu0 %v1795
    %2004 = vmatprep.subr.bf16.mxu0 0
    %2005 = vmatpush2.bf16.msra.mxu0 %v1794
    %2006 = vmatprep.subr.bf16.mxu0 0
    %2007 = vmatpush2.bf16.msra.mxu0 %v1793
    %2008 = vmatprep.subr.bf16.mxu0 0
    %2009 = vmatpush2.bf16.msra.mxu0 %v1792
    %2010 = vmatprep.subr.bf16.mxu0 0
    %2011 = vmatpush2.bf16.msra.mxu0 %v1791
    %2012 = vmatprep.subr.bf16.mxu0 0
    %2013 = vmatpush2.bf16.msra.mxu0 %v1790
    %2014 = vmatprep.mubr.bf16.mxu0 %v1349
    %2015 = vmatmul.mubr.bf16.gmra.mxu0 %v1348
    %v2016 = vpop.f32.mrf.mxu0
    %v2017 = vadd.f32 %v1977, %v2016
    %v2018 = vpop.f32.mrf.mxu0
    %v2019 = vpop.f32.mrf.mxu0
    %v2020 = vpop.f32.mrf.mxu0
    %2021 = vdwg.mxu0
    %v2022 = vadd.f32 %v738, %v2017
    %v2023 = vld [vmem:[%s12] sm:$0x1]
    %v2025 = vlaneseq
    %v2026 = vshrl.u32 %v2025, 7
    %v2027 = vsub.s32 0, %v2026
    %v2028 = vrot.slane %v2023, %v2027
    %v2030 = vadd.f32 %v2022, %v2028
    %2031 = vadd.xlane.f32.xlu0 %v2030
    %v2032 = vpop.xlane.xlu0 %2031
    %v2033 = vmul.f32 %v2032, 0.0078125
    %v2034 = vsub.f32 %v2030, %v2033
    %v2035 = vmul.f32 %v2034, %v2034
    %2036 = vadd.xlane.f32.xlu0 %v2035
    %v2037 = vpop.xlane.xlu0 %2036
    %v2038 = vmul.f32 %v2037, 0.0078125
    %v2039 = vadd.f32 %v2038, 1e-05
    %v2040 = vrsqrt.pop %v2039
    %v2041 = vmul.f32 %v2034, %v2040
    %v2042 = vld [vmem:[%s13] sm:$0x1]
    %v2044 = vlaneseq
    %v2045 = vshrl.u32 %v2044, 7
    %v2046 = vsub.s32 0, %v2045
    %v2047 = vrot.slane %v2042, %v2046
    %v2049 = vmul.f32 %v2041, %v2047
    %v2050 = vld [vmem:[%s14] sm:$0x1]
    %v2052 = vlaneseq
    %v2053 = vshrl.u32 %v2052, 7
    %v2054 = vsub.s32 0, %v2053
    %v2055 = vrot.slane %v2050, %v2054
    %v2057 = vadd.f32 %v2049, %v2055
    %v2058 = vmax.f32 %v2057, 0.0
    %2059 = vst [vmem:[#allocation2] sm:$0xff] %v2058
    // Predicated region
    $region62: #{sematic_proposal_attention.1} parent=1 // pred_check
      _
    $region63: #{sematic_proposal_attention.1} parent=1 // pred_check_branch
      %2061 = sbr.rel (0) target = $region65
    $region64: #{sematic_proposal_attention.1} parent=1 // pred_region
      %s2063 = ssub.s32 128, 128
      %2064 = vsyncadd [#allocation3], %s2063
      %s2066 = sshll.u32 [#allocation2], 4
      %s2067 = int_to_ptr.vmem [resolvable:$true] %s2066
      %2069 = dma.vmem_to_hbm [thread:$0]  %s2067, 128, %s15, [#allocation3]
    $region65: #{sematic_proposal_attention.1} parent=1 // pred_fallthru
      _
    // Predicated region
    $region66: #{sematic_proposal_attention.1} parent=1 // pred_check
      _
    $region67: #{sematic_proposal_attention.1} parent=1 // pred_check_branch
      %2071 = sbr.rel (0) target = $region69
    $region68: #{sematic_proposal_attention.1} parent=1 // pred_region
      _
    $region69: #{sematic_proposal_attention.1} parent=1 // pred_fallthru
      _
    // Predicated region
    $region70: #{sematic_proposal_attention.1} parent=1 // pred_check
      _
    $region71: #{sematic_proposal_attention.1} parent=1 // pred_check_branch
      %2073 = sbr.rel (0) target = $region73
    $region72: #{sematic_proposal_attention.1} parent=1 // pred_region
      %2074 = dma.done [#allocation3], 128
    $region73: #{sematic_proposal_attention.1} parent=1 // pred_fallthru
      _
    // Predicated region
    $region74: #{sematic_proposal_attention.1} parent=1 // pred_check
      _
    $region75: #{sematic_proposal_attention.1} parent=1 // pred_check_branch
      %2076 = sbr.rel (0) target = $region77
    $region76: #{sematic_proposal_attention.1} parent=1 // pred_region
      _
    $region77: #{sematic_proposal_attention.1} parent=1 // pred_fallthru
      _
    %2077 = vsyncpa [#allocation3], 1

</llo_original>
